<compile_context>
chip_gen: v7x
topology: tpu7x:2x2x1
jax: 0.10.0
libtpu: 0.0.40
codegen_flags: <defaults>
</compile_context>

<pallas_src>
import math

import jax
import jax.numpy as jnp
from jax import lax
from jax.experimental import pallas as pl
from jax.experimental.pallas import tpu as pltpu

_LANE = 128  # TPU lane width; the point axis is padded to a multiple of this.


# ----------------------------------------------------------------------------------------
# In-kernel helpers.
# ----------------------------------------------------------------------------------------
def _se3_coeff(u, offset, terms=10):
    """Horner evaluation of sum_k (-1)^k u^k / (2k + offset)!  with u = theta^2.

    offset=1 -> sin(t)/t, offset=2 -> (1-cos t)/t^2, offset=3 -> (t-sin t)/t^3.
    float32-accurate for |theta| <= pi (used instead of jnp.sin/cos inside the kernel).
    """
    acc = ((-1.0) ** (terms - 1)) / math.factorial(2 * (terms - 1) + offset)
    for k in range(terms - 2, -1, -1):
        acc = ((-1.0) ** k) / math.factorial(2 * k + offset) + u * acc
    return acc


def _make_gn_kernel(num_iters):
    """Fused Gauss-Newton kernel for one batch element (all iterations in-kernel)."""

    def kernel(tinit_ref, src_ref, trg_ref, w_ref, icw_ref, out_ref):
        # Initial pose as 12 loop-carried (1, 1) tiles: [R row-major (9) | t (3)].
        tin = tinit_ref[0]                                       # (1, 12)
        pose0 = tuple(tin[:, k:k + 1] for k in range(12))

        def gn_step(_, pose):
            R = [[pose[3 * i + j] for j in range(3)] for i in range(3)]
            t = [pose[9 + i] for i in range(3)]

            src = src_ref[0]                                     # (3, Np)
            trg = trg_ref[0]                                     # (3, Np)
            w = w_ref[0]                                         # (1, Np)
            icw = icw_ref[0]                                     # (9, Np)

            s = [src[i:i + 1, :] for i in range(3)]
            g = [trg[i:i + 1, :] for i in range(3)]
            w2 = w * w
            zero = jnp.zeros_like(w)
            neg1 = jnp.full_like(w, -1.0)

            # W' = w^2 * inv_cov   (symmetric per point -> 6 unique strips).
            Wp = [[None] * 3 for _ in range(3)]
            for i in range(3):
                for j in range(i, 3):
                    v = w2 * icw[3 * i + j:3 * i + j + 1, :]
                    Wp[i][j] = v
                    Wp[j][i] = v

            # q = R p_src + t ; residual e = p_trg - q   ((1,1) x (1,Np) broadcasts).
            q = [R[i][0] * s[0] + R[i][1] * s[1] + R[i][2] * s[2] + t[i]
                 for i in range(3)]
            e = [g[i] - q[i] for i in range(3)]

            # C = [q]_x (rows), W'C, W'e.   Jacobian J = [-I | [q]_x].
            C = [[zero, -q[2], q[1]],
                 [q[2], zero, -q[0]],
                 [-q[1], q[0], zero]]
            WC = [[Wp[a][1] * q[2] - Wp[a][2] * q[1],
                   Wp[a][2] * q[0] - Wp[a][0] * q[2],
                   Wp[a][0] * q[1] - Wp[a][1] * q[0]] for a in range(3)]
            We = [Wp[a][0] * e[0] + Wp[a][1] * e[1] + Wp[a][2] * e[2]
                  for a in range(3)]

            # Gauss-Newton normal equations on the MXU:
            #   M = sum_a P_a @ Q_a^T ;  A = M[:6,:6] = sum_n J^T W' J,  b = M[:6,6].
            M = None
            for a in range(3):
                p_rows = [neg1 if r == a else zero for r in range(3)]
                p_rows += [C[a][0], C[a][1], C[a][2], zero, zero]
                q_rows = [-Wp[a][0], -Wp[a][1], -Wp[a][2],
                          WC[a][0], WC[a][1], WC[a][2], We[a], zero]
                P = jnp.concatenate(p_rows, axis=0)              # (8, Np)
                Q = jnp.concatenate(q_rows, axis=0)              # (8, Np)
                part = jnp.dot(P, Q.T, preferred_element_type=jnp.float32)   # (8, 8)
                M = part if M is None else M + part

            # Damped 6x6 Cholesky solve  (A + lam) xi = -b  on (1,1) tiles (symmetric:
            # only the lower triangle of A is sliced).
            Alow = [[M[i:i + 1, j:j + 1] for j in range(i + 1)] for i in range(6)]
            bv = [M[i:i + 1, 6:7] for i in range(6)]
            for i in range(6):
                Alow[i][i] = Alow[i][i] * (1.0 + 1e-7) + 1e-8    # relative + absolute damping

            L = [[None] * 6 for _ in range(6)]
            for i in range(6):
                for j in range(i + 1):
                    acc = Alow[i][j]
                    for k in range(j):
                        acc = acc - L[i][k] * L[j][k]
                    if i == j:
                        L[i][i] = jnp.sqrt(acc)
                    else:
                        L[i][j] = acc / L[j][j]
            y = [None] * 6
            for i in range(6):
                acc = -bv[i]
                for k in range(i):
                    acc = acc - L[i][k] * y[k]
                y[i] = acc / L[i][i]
            xi = [None] * 6
            for i in range(5, -1, -1):
                acc = y[i]
                for k in range(i + 1, 6):
                    acc = acc - L[k][i] * xi[k]
                xi[i] = acc / L[i][i]

            # SE(3) exponential update  T <- exp(xi) T   (Taylor coefficients in theta^2).
            rho, om = xi[:3], xi[3:]
            u = om[0] * om[0] + om[1] * om[1] + om[2] * om[2]    # theta^2
            ca = _se3_coeff(u, 1)     # sin(t)/t
            cb = _se3_coeff(u, 2)     # (1 - cos t)/t^2
            cc = _se3_coeff(u, 3)     # (t - sin t)/t^3
            Kx = [[None, -om[2], om[1]],
                  [om[2], None, -om[0]],
                  [-om[1], om[0], None]]

            def rot_poly(c1, c2):
                m = [[None] * 3 for _ in range(3)]
                for i in range(3):
                    for j in range(3):
                        outer = om[i] * om[j]
                        if i == j:
                            m[i][j] = 1.0 + c2 * (outer - u)
                        else:
                            m[i][j] = c1 * Kx[i][j] + c2 * outer
                return m

            Rd = rot_poly(ca, cb)     # exp([omega]_x)
            V = rot_poly(cb, cc)      # SO(3) left Jacobian
            dt = [V[i][0] * rho[0] + V[i][1] * rho[1] + V[i][2] * rho[2]
                  for i in range(3)]

            Rn = [[Rd[i][0] * R[0][j] + Rd[i][1] * R[1][j] + Rd[i][2] * R[2][j]
                   for j in range(3)] for i in range(3)]
            tn = [Rd[i][0] * t[0] + Rd[i][1] * t[1] + Rd[i][2] * t[2] + dt[i]
                  for i in range(3)]
            return tuple(Rn[i][j] for i in range(3) for j in range(3)) + tuple(tn)

        pose = lax.fori_loop(0, num_iters, gn_step, pose0)

        out_ref[0] = jnp.concatenate(list(pose), axis=0)         # (12, 1)

    return kernel


def _gauss_newton_pallas(tinit12, src3, trg3, w, icw9, num_iters):
    """Run the fused GN kernel; returns the optimized pose as (B, 12) [R row-major | t]."""
    B, _, Np = src3.shape
    out = pl.pallas_call(
        _make_gn_kernel(num_iters),
        out_shape=jax.ShapeDtypeStruct((B, 12, 1), jnp.float32),
        grid=(B,),
        in_specs=[
            pl.BlockSpec((1, 1, 12), lambda b: (b, 0, 0)),   # initial pose
            pl.BlockSpec((1, 3, Np), lambda b: (b, 0, 0)),   # src points
            pl.BlockSpec((1, 3, Np), lambda b: (b, 0, 0)),   # trg points
            pl.BlockSpec((1, 1, Np), lambda b: (b, 0, 0)),   # weights
            pl.BlockSpec((1, 9, Np), lambda b: (b, 0, 0)),   # inv-cov (flattened 3x3)
        ],
        out_specs=pl.BlockSpec((1, 12, 1), lambda b: (b, 0, 0)),
        compiler_params=pltpu.CompilerParams(dimension_semantics=("parallel",)),
    )(tinit12, src3, trg3, w, icw9)
    return out[:, :, 0]


# ----------------------------------------------------------------------------------------
# Small SE(3) helpers (plain-JAX glue, used outside the kernel).
# ----------------------------------------------------------------------------------------
def _skew(v):
    z = jnp.zeros_like(v[:, :1])
    r0 = jnp.concatenate([z, -v[:, 2:3], v[:, 1:2]], axis=-1)
    r1 = jnp.concatenate([v[:, 2:3], z, -v[:, 0:1]], axis=-1)
    r2 = jnp.concatenate([-v[:, 1:2], v[:, 0:1], z], axis=-1)
    return jnp.stack([r0, r1, r2], axis=1)


def se3_exp(xi):
    """xi = [rho (3), omega (3)] -> (B, 4, 4) SE(3) matrix (reference / test helper)."""
    rho, omega = xi[:, :3], xi[:, 3:6]
    theta2 = jnp.sum(omega * omega, axis=-1, keepdims=True)
    theta = jnp.sqrt(theta2)
    small = theta < 1e-6
    th = jnp.where(small, jnp.ones_like(theta), theta)
    a = jnp.where(small, 1.0 - theta2 / 6.0, jnp.sin(th) / th)
    b = jnp.where(small, 0.5 - theta2 / 24.0, (1.0 - jnp.cos(th)) / (th * th))
    c = jnp.where(small, 1.0 / 6.0 - theta2 / 120.0, (th - jnp.sin(th)) / (th ** 3))
    K = _skew(omega)
    K2 = jnp.matmul(K, K)
    I = jnp.eye(3, dtype=xi.dtype)[None]
    R = I + a[..., None] * K + b[..., None] * K2
    V = I + b[..., None] * K + c[..., None] * K2
    t = jnp.matmul(V, rho[..., None])
    top = jnp.concatenate([R, t], axis=-1)
    bottom = jnp.broadcast_to(
        jnp.array([0.0, 0.0, 0.0, 1.0], dtype=xi.dtype)[None, None, :], (xi.shape[0], 1, 4)
    )
    return jnp.concatenate([top, bottom], axis=1)


def se3_inv(T):
    R = T[..., :3, :3]
    t = T[..., :3, 3:4]
    Rt = jnp.swapaxes(R, -1, -2)
    top = jnp.concatenate([Rt, -jnp.matmul(Rt, t)], axis=-1)
    bottom = jnp.broadcast_to(
        jnp.array([0.0, 0.0, 0.0, 1.0], dtype=T.dtype), T.shape[:-2] + (1, 4)
    )
    return jnp.concatenate([top, bottom], axis=-2)


# ----------------------------------------------------------------------------------------
# Forward pass (mirrors LieOptPoseEstimator.forward).
# ----------------------------------------------------------------------------------------
def lieopt_pose_forward(T_s_v, keypoints_3D_src, keypoints_3D_trg, weights,
                        T_trg_src_init, inv_cov_weights, num_iters=50):
    B = keypoints_3D_src.shape[0]
    N = keypoints_3D_src.shape[-1]
    Np = ((N + _LANE - 1) // _LANE) * _LANE          # lane-align the point axis

    src3 = keypoints_3D_src[:, :3, :].astype(jnp.float32)
    trg3 = keypoints_3D_trg[:, :3, :].astype(jnp.float32)
    w = weights.astype(jnp.float32)
    icw9 = jnp.transpose(inv_cov_weights.astype(jnp.float32), (0, 2, 3, 1)).reshape(B, 9, N)

    pad = Np - N
    if pad:
        # Padded points get weight 0 (and zero inv-cov), so they contribute exactly zero.
        padfn = lambda x: jnp.pad(x, ((0, 0), (0, 0), (0, pad)))
        src3, trg3, w, icw9 = padfn(src3), padfn(trg3), padfn(w), padfn(icw9)

    Ti = T_trg_src_init.astype(jnp.float32)
    tinit12 = jnp.concatenate(
        [Ti[:, :3, :3].reshape(B, 9), Ti[:, :3, 3].reshape(B, 3)], axis=1
    ).reshape(B, 1, 12)

    pose12 = _gauss_newton_pallas(tinit12, src3, trg3, w, icw9, num_iters)   # (B, 12)

    R = pose12[:, :9].reshape(B, 3, 3)
    t = pose12[:, 9:12].reshape(B, 3, 1)
    top = jnp.concatenate([R, t], axis=-1)
    bottom = jnp.broadcast_to(
        jnp.array([0.0, 0.0, 0.0, 1.0], jnp.float32)[None, None, :], (B, 1, 4))
    T_opt = jnp.concatenate([top, bottom], axis=1)

    T_s_v_b = jnp.broadcast_to(T_s_v.astype(jnp.float32), (B, 4, 4))
    return jnp.matmul(jnp.matmul(se3_inv(T_s_v_b), T_opt), T_s_v_b)


class LieOptPoseEstimator:
    """JAX/Pallas re-implementation of the PyTorch/Theseus module's forward pass."""

    def __init__(self, T_s_v, N_batch, N_map, num_iters=50):
        self.T_s_v = jnp.asarray(T_s_v, jnp.float32)
        self.N_batch = N_batch
        self.N_map = N_map
        self.num_iters = num_iters
        self._fwd = jax.jit(lieopt_pose_forward, static_argnames=("num_iters",))

    def __call__(self, keypoints_3D_src, keypoints_3D_trg, weights, T_trg_src_init,
                 inv_cov_weights=None):
        B = keypoints_3D_src.shape[0]
        if inv_cov_weights is None:
            inv_cov_weights = jnp.broadcast_to(
                jnp.eye(3, dtype=jnp.float32), (B, self.N_map, 3, 3)
            )
        return self._fwd(self.T_s_v, keypoints_3D_src, keypoints_3D_trg, weights,
                         T_trg_src_init, inv_cov_weights, num_iters=self.num_iters)


# ----------------------------------------------------------------------------------------
if __name__ == "__main__":
    key = jax.random.PRNGKey(0)
    B, N = 2, 16
    k1, k2, k3, k4 = jax.random.split(key, 4)

    # Source keypoints (homogeneous, B x 4 x N).
    src_xyz = jax.random.normal(k1, (B, 3, N), dtype=jnp.float32)
    src = jnp.concatenate([src_xyz, jnp.ones((B, 1, N), jnp.float32)], axis=1)

    # Ground-truth relative pose and exactly transformed target keypoints.
    xi_gt = 0.2 * jax.random.normal(k2, (B, 6), dtype=jnp.float32)
    T_gt = se3_exp(xi_gt)
    trg = jnp.einsum("bij,bjn->bin", T_gt, src)

    # Weights in (0, 1) and SPD per-point inverse covariance matrices.
    weights = jax.random.uniform(k3, (B, 1, N), jnp.float32, 0.2, 1.0)
    Mrand = 0.3 * jax.random.normal(k4, (B, N, 3, 3), dtype=jnp.float32)
    inv_cov = jnp.matmul(Mrand, jnp.swapaxes(Mrand, -1, -2)) + jnp.eye(3, dtype=jnp.float32)

    # Initial guess (identity) and deterministic vehicle->sensor transform buffer.
    T_init = jnp.broadcast_to(jnp.eye(4, dtype=jnp.float32), (B, 4, 4))
    ca, sa = math.cos(0.2), math.sin(0.2)
    T_s_v = jnp.array(
        [[ca, -sa, 0.0, 0.1],
         [sa,  ca, 0.0, -0.2],
         [0.0, 0.0, 1.0, 0.3],
         [0.0, 0.0, 0.0, 1.0]], dtype=jnp.float32)

    estimator = LieOptPoseEstimator(T_s_v, N_batch=B, N_map=N, num_iters=50)
    T_out = estimator(src, trg, weights, T_init, inv_cov)
    T_out = jax.block_until_ready(T_out)

    # Sanity check: with exact correspondences the minimizer is T_gt, so the output must be
    # se3_inv(T_s_v) @ T_gt @ T_s_v.
    T_expected = jnp.matmul(jnp.matmul(se3_inv(T_s_v)[None], T_gt), T_s_v[None])
    max_err = float(jnp.max(jnp.abs(T_out - T_expected)))
    assert T_out.shape == (B, 4, 4) and T_out.dtype == jnp.float32
    assert max_err < 1e-3, f"pose mismatch, max abs err = {max_err}"

    print("KERNEL_OK")
</pallas_src>

<mosaic_0001>
module attributes {stable_mosaic.version = 11 : i64} {
  func.func @kernel(%arg0: i32, %arg1: memref<1x1x12xf32, #tpu.memory_space<vmem>>, %arg2: memref<1x3x128xf32, #tpu.memory_space<vmem>>, %arg3: memref<1x3x128xf32, #tpu.memory_space<vmem>>, %arg4: memref<1x1x128xf32, #tpu.memory_space<vmem>>, %arg5: memref<1x9x128xf32, #tpu.memory_space<vmem>>, %arg6: memref<1x12x1xf32, #tpu.memory_space<vmem>>) attributes {dimension_semantics = [#tpu.dimension_semantics<parallel>], iteration_bounds = array<i64: 2>, scalar_prefetch = 0 : i64, scratch_operands = 0 : i64, tpu.core_type = #tpu.core_type<tc>, window_params = [{transform_indices = @transform_0, window_bounds = array<i64: 1, 1, 12>}, {transform_indices = @transform_1, window_bounds = array<i64: 1, 3, 128>}, {transform_indices = @transform_2, window_bounds = array<i64: 1, 3, 128>}, {transform_indices = @transform_3, window_bounds = array<i64: 1, 1, 128>}, {transform_indices = @transform_4, window_bounds = array<i64: 1, 9, 128>}, {transform_indices = @transform_5, window_bounds = array<i64: 1, 12, 1>}]} {
    %c0 = arith.constant 0 : index
    %c0_0 = arith.constant 0 : index
    %c0_1 = arith.constant 0 : index
    %0 = vector.load %arg1[%c0, %c0_0, %c0_1] : memref<1x1x12xf32, #tpu.memory_space<vmem>>, vector<1x1x12xf32>
    %1 = vector.shape_cast %0 : vector<1x1x12xf32> to vector<1x12xf32>
    %2 = vector.extract_strided_slice %1 {offsets = [0, 0], sizes = [1, 1], strides = [1, 1]} : vector<1x12xf32> to vector<1x1xf32>
    %3 = vector.extract_strided_slice %1 {offsets = [0, 1], sizes = [1, 1], strides = [1, 1]} : vector<1x12xf32> to vector<1x1xf32>
    %4 = vector.extract_strided_slice %1 {offsets = [0, 2], sizes = [1, 1], strides = [1, 1]} : vector<1x12xf32> to vector<1x1xf32>
    %5 = vector.extract_strided_slice %1 {offsets = [0, 3], sizes = [1, 1], strides = [1, 1]} : vector<1x12xf32> to vector<1x1xf32>
    %6 = vector.extract_strided_slice %1 {offsets = [0, 4], sizes = [1, 1], strides = [1, 1]} : vector<1x12xf32> to vector<1x1xf32>
    %7 = vector.extract_strided_slice %1 {offsets = [0, 5], sizes = [1, 1], strides = [1, 1]} : vector<1x12xf32> to vector<1x1xf32>
    %8 = vector.extract_strided_slice %1 {offsets = [0, 6], sizes = [1, 1], strides = [1, 1]} : vector<1x12xf32> to vector<1x1xf32>
    %9 = vector.extract_strided_slice %1 {offsets = [0, 7], sizes = [1, 1], strides = [1, 1]} : vector<1x12xf32> to vector<1x1xf32>
    %10 = vector.extract_strided_slice %1 {offsets = [0, 8], sizes = [1, 1], strides = [1, 1]} : vector<1x12xf32> to vector<1x1xf32>
    %11 = vector.extract_strided_slice %1 {offsets = [0, 9], sizes = [1, 1], strides = [1, 1]} : vector<1x12xf32> to vector<1x1xf32>
    %12 = vector.extract_strided_slice %1 {offsets = [0, 10], sizes = [1, 1], strides = [1, 1]} : vector<1x12xf32> to vector<1x1xf32>
    %13 = vector.extract_strided_slice %1 {offsets = [0, 11], sizes = [1, 1], strides = [1, 1]} : vector<1x12xf32> to vector<1x1xf32>
    %c0_i32 = arith.constant 0 : i32
    %c50_i32 = arith.constant 50 : i32
    %14 = arith.addi %c0_i32, %c50_i32 : i32
    %c1_i32 = arith.constant 1 : i32
    %15:12 = scf.for %arg7 = %c0_i32 to %14 step %c1_i32 iter_args(%arg8 = %2, %arg9 = %3, %arg10 = %4, %arg11 = %5, %arg12 = %6, %arg13 = %7, %arg14 = %8, %arg15 = %9, %arg16 = %10, %arg17 = %11, %arg18 = %12, %arg19 = %13) -> (vector<1x1xf32>, vector<1x1xf32>, vector<1x1xf32>, vector<1x1xf32>, vector<1x1xf32>, vector<1x1xf32>, vector<1x1xf32>, vector<1x1xf32>, vector<1x1xf32>, vector<1x1xf32>, vector<1x1xf32>, vector<1x1xf32>)  : i32 {
      %c0_5 = arith.constant 0 : index
      %c0_6 = arith.constant 0 : index
      %c0_7 = arith.constant 0 : index
      %20 = vector.load %arg2[%c0_5, %c0_6, %c0_7] : memref<1x3x128xf32, #tpu.memory_space<vmem>>, vector<1x3x128xf32>
      %21 = vector.shape_cast %20 : vector<1x3x128xf32> to vector<3x128xf32>
      %c0_8 = arith.constant 0 : index
      %c0_9 = arith.constant 0 : index
      %c0_10 = arith.constant 0 : index
      %22 = vector.load %arg3[%c0_8, %c0_9, %c0_10] : memref<1x3x128xf32, #tpu.memory_space<vmem>>, vector<1x3x128xf32>
      %23 = vector.shape_cast %22 : vector<1x3x128xf32> to vector<3x128xf32>
      %c0_11 = arith.constant 0 : index
      %c0_12 = arith.constant 0 : index
      %c0_13 = arith.constant 0 : index
      %24 = vector.load %arg4[%c0_11, %c0_12, %c0_13] : memref<1x1x128xf32, #tpu.memory_space<vmem>>, vector<1x1x128xf32>
      %25 = vector.shape_cast %24 : vector<1x1x128xf32> to vector<1x128xf32>
      %c0_14 = arith.constant 0 : index
      %c0_15 = arith.constant 0 : index
      %c0_16 = arith.constant 0 : index
      %26 = vector.load %arg5[%c0_14, %c0_15, %c0_16] : memref<1x9x128xf32, #tpu.memory_space<vmem>>, vector<1x9x128xf32>
      %27 = vector.shape_cast %26 : vector<1x9x128xf32> to vector<9x128xf32>
      %28 = vector.extract_strided_slice %21 {offsets = [0, 0], sizes = [1, 128], strides = [1, 1]} : vector<3x128xf32> to vector<1x128xf32>
      %29 = vector.extract_strided_slice %21 {offsets = [1, 0], sizes = [1, 128], strides = [1, 1]} : vector<3x128xf32> to vector<1x128xf32>
      %30 = vector.extract_strided_slice %21 {offsets = [2, 0], sizes = [1, 128], strides = [1, 1]} : vector<3x128xf32> to vector<1x128xf32>
      %31 = vector.extract_strided_slice %23 {offsets = [0, 0], sizes = [1, 128], strides = [1, 1]} : vector<3x128xf32> to vector<1x128xf32>
      %32 = vector.extract_strided_slice %23 {offsets = [1, 0], sizes = [1, 128], strides = [1, 1]} : vector<3x128xf32> to vector<1x128xf32>
      %33 = vector.extract_strided_slice %23 {offsets = [2, 0], sizes = [1, 128], strides = [1, 1]} : vector<3x128xf32> to vector<1x128xf32>
      %34 = arith.mulf %25, %25 : vector<1x128xf32>
      %cst = arith.constant 0.000000e+00 : f32
      %35 = vector.broadcast %cst : f32 to vector<1x128xf32>
      %cst_17 = arith.constant -1.000000e+00 : f32
      %36 = vector.broadcast %cst_17 : f32 to vector<1x128xf32>
      %37 = vector.extract_strided_slice %27 {offsets = [0, 0], sizes = [1, 128], strides = [1, 1]} : vector<9x128xf32> to vector<1x128xf32>
      %38 = arith.mulf %34, %37 : vector<1x128xf32>
      %39 = vector.extract_strided_slice %27 {offsets = [1, 0], sizes = [1, 128], strides = [1, 1]} : vector<9x128xf32> to vector<1x128xf32>
      %40 = arith.mulf %34, %39 : vector<1x128xf32>
      %41 = vector.extract_strided_slice %27 {offsets = [2, 0], sizes = [1, 128], strides = [1, 1]} : vector<9x128xf32> to vector<1x128xf32>
      %42 = arith.mulf %34, %41 : vector<1x128xf32>
      %43 = vector.extract_strided_slice %27 {offsets = [4, 0], sizes = [1, 128], strides = [1, 1]} : vector<9x128xf32> to vector<1x128xf32>
      %44 = arith.mulf %34, %43 : vector<1x128xf32>
      %45 = vector.extract_strided_slice %27 {offsets = [5, 0], sizes = [1, 128], strides = [1, 1]} : vector<9x128xf32> to vector<1x128xf32>
      %46 = arith.mulf %34, %45 : vector<1x128xf32>
      %47 = vector.extract_strided_slice %27 {offsets = [8, 0], sizes = [1, 128], strides = [1, 1]} : vector<9x128xf32> to vector<1x128xf32>
      %48 = arith.mulf %34, %47 : vector<1x128xf32>
      %49 = vector.broadcast %arg8 : vector<1x1xf32> to vector<1x128xf32>
      %50 = arith.mulf %49, %28 : vector<1x128xf32>
      %51 = vector.broadcast %arg9 : vector<1x1xf32> to vector<1x128xf32>
      %52 = arith.mulf %51, %29 : vector<1x128xf32>
      %53 = arith.addf %50, %52 : vector<1x128xf32>
      %54 = vector.broadcast %arg10 : vector<1x1xf32> to vector<1x128xf32>
      %55 = arith.mulf %54, %30 : vector<1x128xf32>
      %56 = arith.addf %53, %55 : vector<1x128xf32>
      %57 = vector.broadcast %arg17 : vector<1x1xf32> to vector<1x128xf32>
      %58 = arith.addf %56, %57 : vector<1x128xf32>
      %59 = vector.broadcast %arg11 : vector<1x1xf32> to vector<1x128xf32>
      %60 = arith.mulf %59, %28 : vector<1x128xf32>
      %61 = vector.broadcast %arg12 : vector<1x1xf32> to vector<1x128xf32>
      %62 = arith.mulf %61, %29 : vector<1x128xf32>
      %63 = arith.addf %60, %62 : vector<1x128xf32>
      %64 = vector.broadcast %arg13 : vector<1x1xf32> to vector<1x128xf32>
      %65 = arith.mulf %64, %30 : vector<1x128xf32>
      %66 = arith.addf %63, %65 : vector<1x128xf32>
      %67 = vector.broadcast %arg18 : vector<1x1xf32> to vector<1x128xf32>
      %68 = arith.addf %66, %67 : vector<1x128xf32>
      %69 = vector.broadcast %arg14 : vector<1x1xf32> to vector<1x128xf32>
      %70 = arith.mulf %69, %28 : vector<1x128xf32>
      %71 = vector.broadcast %arg15 : vector<1x1xf32> to vector<1x128xf32>
      %72 = arith.mulf %71, %29 : vector<1x128xf32>
      %73 = arith.addf %70, %72 : vector<1x128xf32>
      %74 = vector.broadcast %arg16 : vector<1x1xf32> to vector<1x128xf32>
      %75 = arith.mulf %74, %30 : vector<1x128xf32>
      %76 = arith.addf %73, %75 : vector<1x128xf32>
      %77 = vector.broadcast %arg19 : vector<1x1xf32> to vector<1x128xf32>
      %78 = arith.addf %76, %77 : vector<1x128xf32>
      %79 = arith.subf %31, %58 : vector<1x128xf32>
      %80 = arith.subf %32, %68 : vector<1x128xf32>
      %81 = arith.subf %33, %78 : vector<1x128xf32>
      %cst_18 = arith.constant 0.000000e+00 : f32
      %82 = vector.broadcast %cst_18 : f32 to vector<1x128xf32>
      %83 = arith.subf %82, %78 : vector<1x128xf32>
      %cst_19 = arith.constant 0.000000e+00 : f32
      %84 = vector.broadcast %cst_19 : f32 to vector<1x128xf32>
      %85 = arith.subf %84, %58 : vector<1x128xf32>
      %cst_20 = arith.constant 0.000000e+00 : f32
      %86 = vector.broadcast %cst_20 : f32 to vector<1x128xf32>
      %87 = arith.subf %86, %68 : vector<1x128xf32>
      %88 = arith.mulf %40, %78 : vector<1x128xf32>
      %89 = arith.mulf %42, %68 : vector<1x128xf32>
      %90 = arith.subf %88, %89 : vector<1x128xf32>
      %91 = arith.mulf %42, %58 : vector<1x128xf32>
      %92 = arith.mulf %38, %78 : vector<1x128xf32>
      %93 = arith.subf %91, %92 : vector<1x128xf32>
      %94 = arith.mulf %38, %68 : vector<1x128xf32>
      %95 = arith.mulf %40, %58 : vector<1x128xf32>
      %96 = arith.subf %94, %95 : vector<1x128xf32>
      %97 = arith.mulf %44, %78 : vector<1x128xf32>
      %98 = arith.mulf %46, %68 : vector<1x128xf32>
      %99 = arith.subf %97, %98 : vector<1x128xf32>
      %100 = arith.mulf %46, %58 : vector<1x128xf32>
      %101 = arith.mulf %40, %78 : vector<1x128xf32>
      %102 = arith.subf %100, %101 : vector<1x128xf32>
      %103 = arith.mulf %40, %68 : vector<1x128xf32>
      %104 = arith.mulf %44, %58 : vector<1x128xf32>
      %105 = arith.subf %103, %104 : vector<1x128xf32>
      %106 = arith.mulf %46, %78 : vector<1x128xf32>
      %107 = arith.mulf %48, %68 : vector<1x128xf32>
      %108 = arith.subf %106, %107 : vector<1x128xf32>
      %109 = arith.mulf %48, %58 : vector<1x128xf32>
      %110 = arith.mulf %42, %78 : vector<1x128xf32>
      %111 = arith.subf %109, %110 : vector<1x128xf32>
      %112 = arith.mulf %42, %68 : vector<1x128xf32>
      %113 = arith.mulf %46, %58 : vector<1x128xf32>
      %114 = arith.subf %112, %113 : vector<1x128xf32>
      %115 = arith.mulf %38, %79 : vector<1x128xf32>
      %116 = arith.mulf %40, %80 : vector<1x128xf32>
      %117 = arith.addf %115, %116 : vector<1x128xf32>
      %118 = arith.mulf %42, %81 : vector<1x128xf32>
      %119 = arith.addf %117, %118 : vector<1x128xf32>
      %120 = arith.mulf %40, %79 : vector<1x128xf32>
      %121 = arith.mulf %44, %80 : vector<1x128xf32>
      %122 = arith.addf %120, %121 : vector<1x128xf32>
      %123 = arith.mulf %46, %81 : vector<1x128xf32>
      %124 = arith.addf %122, %123 : vector<1x128xf32>
      %125 = arith.mulf %42, %79 : vector<1x128xf32>
      %126 = arith.mulf %46, %80 : vector<1x128xf32>
      %127 = arith.addf %125, %126 : vector<1x128xf32>
      %128 = arith.mulf %48, %81 : vector<1x128xf32>
      %129 = arith.addf %127, %128 : vector<1x128xf32>
      %cst_21 = arith.constant 0.000000e+00 : f32
      %130 = vector.broadcast %cst_21 : f32 to vector<1x128xf32>
      %131 = arith.subf %130, %38 : vector<1x128xf32>
      %cst_22 = arith.constant 0.000000e+00 : f32
      %132 = vector.broadcast %cst_22 : f32 to vector<1x128xf32>
      %133 = arith.subf %132, %40 : vector<1x128xf32>
      %cst_23 = arith.constant 0.000000e+00 : f32
      %134 = vector.broadcast %cst_23 : f32 to vector<1x128xf32>
      %135 = arith.subf %134, %42 : vector<1x128xf32>
      %136 = tpu.concatenate %36, %35, %35, %35, %83, %68, %35, %35 in 0 : vector<1x128xf32>, vector<1x128xf32>, vector<1x128xf32>, vector<1x128xf32>, vector<1x128xf32>, vector<1x128xf32>, vector<1x128xf32>, vector<1x128xf32> -> vector<8x128xf32>
      %137 = tpu.concatenate %131, %133, %135, %90, %93, %96, %119, %35 in 0 : vector<1x128xf32>, vector<1x128xf32>, vector<1x128xf32>, vector<1x128xf32>, vector<1x128xf32>, vector<1x128xf32>, vector<1x128xf32>, vector<1x128xf32> -> vector<8x128xf32>
      %138 = tpu.transpose %137, [1, 0] : vector<8x128xf32> -> vector<128x8xf32>
      %cst_24 = arith.constant dense<0.000000e+00> : vector<8x8xf32>
      %139 = tpu.matmul %136, %138, %cst_24 {dimension_numbers = #tpu.dot_dimension_numbers<[1], [0], [0], [1], [0, 0, 1, 1], [], []>} : vector<8x128xf32>, vector<128x8xf32>, vector<8x8xf32> -> vector<8x8xf32>
      %cst_25 = arith.constant 0.000000e+00 : f32
      %140 = vector.broadcast %cst_25 : f32 to vector<1x128xf32>
      %141 = arith.subf %140, %40 : vector<1x128xf32>
      %cst_26 = arith.constant 0.000000e+00 : f32
      %142 = vector.broadcast %cst_26 : f32 to vector<1x128xf32>
      %143 = arith.subf %142, %44 : vector<1x128xf32>
      %cst_27 = arith.constant 0.000000e+00 : f32
      %144 = vector.broadcast %cst_27 : f32 to vector<1x128xf32>
      %145 = arith.subf %144, %46 : vector<1x128xf32>
      %146 = tpu.concatenate %35, %36, %35, %78, %35, %85, %35, %35 in 0 : vector<1x128xf32>, vector<1x128xf32>, vector<1x128xf32>, vector<1x128xf32>, vector<1x128xf32>, vector<1x128xf32>, vector<1x128xf32>, vector<1x128xf32> -> vector<8x128xf32>
      %147 = tpu.concatenate %141, %143, %145, %99, %102, %105, %124, %35 in 0 : vector<1x128xf32>, vector<1x128xf32>, vector<1x128xf32>, vector<1x128xf32>, vector<1x128xf32>, vector<1x128xf32>, vector<1x128xf32>, vector<1x128xf32> -> vector<8x128xf32>
      %148 = tpu.transpose %147, [1, 0] : vector<8x128xf32> -> vector<128x8xf32>
      %cst_28 = arith.constant dense<0.000000e+00> : vector<8x8xf32>
      %149 = tpu.matmul %146, %148, %cst_28 {dimension_numbers = #tpu.dot_dimension_numbers<[1], [0], [0], [1], [0, 0, 1, 1], [], []>} : vector<8x128xf32>, vector<128x8xf32>, vector<8x8xf32> -> vector<8x8xf32>
      %150 = arith.addf %139, %149 : vector<8x8xf32>
      %cst_29 = arith.constant 0.000000e+00 : f32
      %151 = vector.broadcast %cst_29 : f32 to vector<1x128xf32>
      %152 = arith.subf %151, %42 : vector<1x128xf32>
      %cst_30 = arith.constant 0.000000e+00 : f32
      %153 = vector.broadcast %cst_30 : f32 to vector<1x128xf32>
      %154 = arith.subf %153, %46 : vector<1x128xf32>
      %cst_31 = arith.constant 0.000000e+00 : f32
      %155 = vector.broadcast %cst_31 : f32 to vector<1x128xf32>
      %156 = arith.subf %155, %48 : vector<1x128xf32>
      %157 = tpu.concatenate %35, %35, %36, %87, %58, %35, %35, %35 in 0 : vector<1x128xf32>, vector<1x128xf32>, vector<1x128xf32>, vector<1x128xf32>, vector<1x128xf32>, vector<1x128xf32>, vector<1x128xf32>, vector<1x128xf32> -> vector<8x128xf32>
      %158 = tpu.concatenate %152, %154, %156, %108, %111, %114, %129, %35 in 0 : vector<1x128xf32>, vector<1x128xf32>, vector<1x128xf32>, vector<1x128xf32>, vector<1x128xf32>, vector<1x128xf32>, vector<1x128xf32>, vector<1x128xf32> -> vector<8x128xf32>
      %159 = tpu.transpose %158, [1, 0] : vector<8x128xf32> -> vector<128x8xf32>
      %cst_32 = arith.constant dense<0.000000e+00> : vector<8x8xf32>
      %160 = tpu.matmul %157, %159, %cst_32 {dimension_numbers = #tpu.dot_dimension_numbers<[1], [0], [0], [1], [0, 0, 1, 1], [], []>} : vector<8x128xf32>, vector<128x8xf32>, vector<8x8xf32> -> vector<8x8xf32>
      %161 = arith.addf %150, %160 : vector<8x8xf32>
      %162 = vector.extract_strided_slice %161 {offsets = [0, 0], sizes = [1, 1], strides = [1, 1]} : vector<8x8xf32> to vector<1x1xf32>
      %163 = vector.extract_strided_slice %161 {offsets = [1, 0], sizes = [1, 1], strides = [1, 1]} : vector<8x8xf32> to vector<1x1xf32>
      %164 = vector.extract_strided_slice %161 {offsets = [1, 1], sizes = [1, 1], strides = [1, 1]} : vector<8x8xf32> to vector<1x1xf32>
      %165 = vector.extract_strided_slice %161 {offsets = [2, 0], sizes = [1, 1], strides = [1, 1]} : vector<8x8xf32> to vector<1x1xf32>
      %166 = vector.extract_strided_slice %161 {offsets = [2, 1], sizes = [1, 1], strides = [1, 1]} : vector<8x8xf32> to vector<1x1xf32>
      %167 = vector.extract_strided_slice %161 {offsets = [2, 2], sizes = [1, 1], strides = [1, 1]} : vector<8x8xf32> to vector<1x1xf32>
      %168 = vector.extract_strided_slice %161 {offsets = [3, 0], sizes = [1, 1], strides = [1, 1]} : vector<8x8xf32> to vector<1x1xf32>
      %169 = vector.extract_strided_slice %161 {offsets = [3, 1], sizes = [1, 1], strides = [1, 1]} : vector<8x8xf32> to vector<1x1xf32>
      %170 = vector.extract_strided_slice %161 {offsets = [3, 2], sizes = [1, 1], strides = [1, 1]} : vector<8x8xf32> to vector<1x1xf32>
      %171 = vector.extract_strided_slice %161 {offsets = [3, 3], sizes = [1, 1], strides = [1, 1]} : vector<8x8xf32> to vector<1x1xf32>
      %172 = vector.extract_strided_slice %161 {offsets = [4, 0], sizes = [1, 1], strides = [1, 1]} : vector<8x8xf32> to vector<1x1xf32>
      %173 = vector.extract_strided_slice %161 {offsets = [4, 1], sizes = [1, 1], strides = [1, 1]} : vector<8x8xf32> to vector<1x1xf32>
      %174 = vector.extract_strided_slice %161 {offsets = [4, 2], sizes = [1, 1], strides = [1, 1]} : vector<8x8xf32> to vector<1x1xf32>
      %175 = vector.extract_strided_slice %161 {offsets = [4, 3], sizes = [1, 1], strides = [1, 1]} : vector<8x8xf32> to vector<1x1xf32>
      %176 = vector.extract_strided_slice %161 {offsets = [4, 4], sizes = [1, 1], strides = [1, 1]} : vector<8x8xf32> to vector<1x1xf32>
      %177 = vector.extract_strided_slice %161 {offsets = [5, 0], sizes = [1, 1], strides = [1, 1]} : vector<8x8xf32> to vector<1x1xf32>
      %178 = vector.extract_strided_slice %161 {offsets = [5, 1], sizes = [1, 1], strides = [1, 1]} : vector<8x8xf32> to vector<1x1xf32>
      %179 = vector.extract_strided_slice %161 {offsets = [5, 2], sizes = [1, 1], strides = [1, 1]} : vector<8x8xf32> to vector<1x1xf32>
      %180 = vector.extract_strided_slice %161 {offsets = [5, 3], sizes = [1, 1], strides = [1, 1]} : vector<8x8xf32> to vector<1x1xf32>
      %181 = vector.extract_strided_slice %161 {offsets = [5, 4], sizes = [1, 1], strides = [1, 1]} : vector<8x8xf32> to vector<1x1xf32>
      %182 = vector.extract_strided_slice %161 {offsets = [5, 5], sizes = [1, 1], strides = [1, 1]} : vector<8x8xf32> to vector<1x1xf32>
      %183 = vector.extract_strided_slice %161 {offsets = [0, 6], sizes = [1, 1], strides = [1, 1]} : vector<8x8xf32> to vector<1x1xf32>
      %184 = vector.extract_strided_slice %161 {offsets = [1, 6], sizes = [1, 1], strides = [1, 1]} : vector<8x8xf32> to vector<1x1xf32>
      %185 = vector.extract_strided_slice %161 {offsets = [2, 6], sizes = [1, 1], strides = [1, 1]} : vector<8x8xf32> to vector<1x1xf32>
      %186 = vector.extract_strided_slice %161 {offsets = [3, 6], sizes = [1, 1], strides = [1, 1]} : vector<8x8xf32> to vector<1x1xf32>
      %187 = vector.extract_strided_slice %161 {offsets = [4, 6], sizes = [1, 1], strides = [1, 1]} : vector<8x8xf32> to vector<1x1xf32>
      %188 = vector.extract_strided_slice %161 {offsets = [5, 6], sizes = [1, 1], strides = [1, 1]} : vector<8x8xf32> to vector<1x1xf32>
      %cst_33 = arith.constant 1.00000012 : f32
      %189 = vector.broadcast %cst_33 : f32 to vector<1x1xf32>
      %190 = arith.mulf %162, %189 : vector<1x1xf32>
      %cst_34 = arith.constant 9.99999993E-9 : f32
      %191 = vector.broadcast %cst_34 : f32 to vector<1x1xf32>
      %192 = arith.addf %190, %191 : vector<1x1xf32>
      %cst_35 = arith.constant 1.00000012 : f32
      %193 = vector.broadcast %cst_35 : f32 to vector<1x1xf32>
      %194 = arith.mulf %164, %193 : vector<1x1xf32>
      %cst_36 = arith.constant 9.99999993E-9 : f32
      %195 = vector.broadcast %cst_36 : f32 to vector<1x1xf32>
      %196 = arith.addf %194, %195 : vector<1x1xf32>
      %cst_37 = arith.constant 1.00000012 : f32
      %197 = vector.broadcast %cst_37 : f32 to vector<1x1xf32>
      %198 = arith.mulf %167, %197 : vector<1x1xf32>
      %cst_38 = arith.constant 9.99999993E-9 : f32
      %199 = vector.broadcast %cst_38 : f32 to vector<1x1xf32>
      %200 = arith.addf %198, %199 : vector<1x1xf32>
      %cst_39 = arith.constant 1.00000012 : f32
      %201 = vector.broadcast %cst_39 : f32 to vector<1x1xf32>
      %202 = arith.mulf %171, %201 : vector<1x1xf32>
      %cst_40 = arith.constant 9.99999993E-9 : f32
      %203 = vector.broadcast %cst_40 : f32 to vector<1x1xf32>
      %204 = arith.addf %202, %203 : vector<1x1xf32>
      %cst_41 = arith.constant 1.00000012 : f32
      %205 = vector.broadcast %cst_41 : f32 to vector<1x1xf32>
      %206 = arith.mulf %176, %205 : vector<1x1xf32>
      %cst_42 = arith.constant 9.99999993E-9 : f32
      %207 = vector.broadcast %cst_42 : f32 to vector<1x1xf32>
      %208 = arith.addf %206, %207 : vector<1x1xf32>
      %cst_43 = arith.constant 1.00000012 : f32
      %209 = vector.broadcast %cst_43 : f32 to vector<1x1xf32>
      %210 = arith.mulf %182, %209 : vector<1x1xf32>
      %cst_44 = arith.constant 9.99999993E-9 : f32
      %211 = vector.broadcast %cst_44 : f32 to vector<1x1xf32>
      %212 = arith.addf %210, %211 : vector<1x1xf32>
      %213 = math.sqrt %192 : vector<1x1xf32>
      %214 = arith.divf %163, %213 : vector<1x1xf32>
      %215 = arith.mulf %214, %214 : vector<1x1xf32>
      %216 = arith.subf %196, %215 : vector<1x1xf32>
      %217 = math.sqrt %216 : vector<1x1xf32>
      %218 = arith.divf %165, %213 : vector<1x1xf32>
      %219 = arith.mulf %218, %214 : vector<1x1xf32>
      %220 = arith.subf %166, %219 : vector<1x1xf32>
      %221 = arith.divf %220, %217 : vector<1x1xf32>
      %222 = arith.mulf %218, %218 : vector<1x1xf32>
      %223 = arith.subf %200, %222 : vector<1x1xf32>
      %224 = arith.mulf %221, %221 : vector<1x1xf32>
      %225 = arith.subf %223, %224 : vector<1x1xf32>
      %226 = math.sqrt %225 : vector<1x1xf32>
      %227 = arith.divf %168, %213 : vector<1x1xf32>
      %228 = arith.mulf %227, %214 : vector<1x1xf32>
      %229 = arith.subf %169, %228 : vector<1x1xf32>
      %230 = arith.divf %229, %217 : vector<1x1xf32>
      %231 = arith.mulf %227, %218 : vector<1x1xf32>
      %232 = arith.subf %170, %231 : vector<1x1xf32>
      %233 = arith.mulf %230, %221 : vector<1x1xf32>
      %234 = arith.subf %232, %233 : vector<1x1xf32>
      %235 = arith.divf %234, %226 : vector<1x1xf32>
      %236 = arith.mulf %227, %227 : vector<1x1xf32>
      %237 = arith.subf %204, %236 : vector<1x1xf32>
      %238 = arith.mulf %230, %230 : vector<1x1xf32>
      %239 = arith.subf %237, %238 : vector<1x1xf32>
      %240 = arith.mulf %235, %235 : vector<1x1xf32>
      %241 = arith.subf %239, %240 : vector<1x1xf32>
      %242 = math.sqrt %241 : vector<1x1xf32>
      %243 = arith.divf %172, %213 : vector<1x1xf32>
      %244 = arith.mulf %243, %214 : vector<1x1xf32>
      %245 = arith.subf %173, %244 : vector<1x1xf32>
      %246 = arith.divf %245, %217 : vector<1x1xf32>
      %247 = arith.mulf %243, %218 : vector<1x1xf32>
      %248 = arith.subf %174, %247 : vector<1x1xf32>
      %249 = arith.mulf %246, %221 : vector<1x1xf32>
      %250 = arith.subf %248, %249 : vector<1x1xf32>
      %251 = arith.divf %250, %226 : vector<1x1xf32>
      %252 = arith.mulf %243, %227 : vector<1x1xf32>
      %253 = arith.subf %175, %252 : vector<1x1xf32>
      %254 = arith.mulf %246, %230 : vector<1x1xf32>
      %255 = arith.subf %253, %254 : vector<1x1xf32>
      %256 = arith.mulf %251, %235 : vector<1x1xf32>
      %257 = arith.subf %255, %256 : vector<1x1xf32>
      %258 = arith.divf %257, %242 : vector<1x1xf32>
      %259 = arith.mulf %243, %243 : vector<1x1xf32>
      %260 = arith.subf %208, %259 : vector<1x1xf32>
      %261 = arith.mulf %246, %246 : vector<1x1xf32>
      %262 = arith.subf %260, %261 : vector<1x1xf32>
      %263 = arith.mulf %251, %251 : vector<1x1xf32>
      %264 = arith.subf %262, %263 : vector<1x1xf32>
      %265 = arith.mulf %258, %258 : vector<1x1xf32>
      %266 = arith.subf %264, %265 : vector<1x1xf32>
      %267 = math.sqrt %266 : vector<1x1xf32>
      %268 = arith.divf %177, %213 : vector<1x1xf32>
      %269 = arith.mulf %268, %214 : vector<1x1xf32>
      %270 = arith.subf %178, %269 : vector<1x1xf32>
      %271 = arith.divf %270, %217 : vector<1x1xf32>
      %272 = arith.mulf %268, %218 : vector<1x1xf32>
      %273 = arith.subf %179, %272 : vector<1x1xf32>
      %274 = arith.mulf %271, %221 : vector<1x1xf32>
      %275 = arith.subf %273, %274 : vector<1x1xf32>
      %276 = arith.divf %275, %226 : vector<1x1xf32>
      %277 = arith.mulf %268, %227 : vector<1x1xf32>
      %278 = arith.subf %180, %277 : vector<1x1xf32>
      %279 = arith.mulf %271, %230 : vector<1x1xf32>
      %280 = arith.subf %278, %279 : vector<1x1xf32>
      %281 = arith.mulf %276, %235 : vector<1x1xf32>
      %282 = arith.subf %280, %281 : vector<1x1xf32>
      %283 = arith.divf %282, %242 : vector<1x1xf32>
      %284 = arith.mulf %268, %243 : vector<1x1xf32>
      %285 = arith.subf %181, %284 : vector<1x1xf32>
      %286 = arith.mulf %271, %246 : vector<1x1xf32>
      %287 = arith.subf %285, %286 : vector<1x1xf32>
      %288 = arith.mulf %276, %251 : vector<1x1xf32>
      %289 = arith.subf %287, %288 : vector<1x1xf32>
      %290 = arith.mulf %283, %258 : vector<1x1xf32>
      %291 = arith.subf %289, %290 : vector<1x1xf32>
      %292 = arith.divf %291, %267 : vector<1x1xf32>
      %293 = arith.mulf %268, %268 : vector<1x1xf32>
      %294 = arith.subf %212, %293 : vector<1x1xf32>
      %295 = arith.mulf %271, %271 : vector<1x1xf32>
      %296 = arith.subf %294, %295 : vector<1x1xf32>
      %297 = arith.mulf %276, %276 : vector<1x1xf32>
      %298 = arith.subf %296, %297 : vector<1x1xf32>
      %299 = arith.mulf %283, %283 : vector<1x1xf32>
      %300 = arith.subf %298, %299 : vector<1x1xf32>
      %301 = arith.mulf %292, %292 : vector<1x1xf32>
      %302 = arith.subf %300, %301 : vector<1x1xf32>
      %303 = math.sqrt %302 : vector<1x1xf32>
      %cst_45 = arith.constant 0.000000e+00 : f32
      %304 = vector.broadcast %cst_45 : f32 to vector<1x1xf32>
      %305 = arith.subf %304, %183 : vector<1x1xf32>
      %306 = arith.divf %305, %213 : vector<1x1xf32>
      %cst_46 = arith.constant 0.000000e+00 : f32
      %307 = vector.broadcast %cst_46 : f32 to vector<1x1xf32>
      %308 = arith.subf %307, %184 : vector<1x1xf32>
      %309 = arith.mulf %214, %306 : vector<1x1xf32>
      %310 = arith.subf %308, %309 : vector<1x1xf32>
      %311 = arith.divf %310, %217 : vector<1x1xf32>
      %cst_47 = arith.constant 0.000000e+00 : f32
      %312 = vector.broadcast %cst_47 : f32 to vector<1x1xf32>
      %313 = arith.subf %312, %185 : vector<1x1xf32>
      %314 = arith.mulf %218, %306 : vector<1x1xf32>
      %315 = arith.subf %313, %314 : vector<1x1xf32>
      %316 = arith.mulf %221, %311 : vector<1x1xf32>
      %317 = arith.subf %315, %316 : vector<1x1xf32>
      %318 = arith.divf %317, %226 : vector<1x1xf32>
      %cst_48 = arith.constant 0.000000e+00 : f32
      %319 = vector.broadcast %cst_48 : f32 to vector<1x1xf32>
      %320 = arith.subf %319, %186 : vector<1x1xf32>
      %321 = arith.mulf %227, %306 : vector<1x1xf32>
      %322 = arith.subf %320, %321 : vector<1x1xf32>
      %323 = arith.mulf %230, %311 : vector<1x1xf32>
      %324 = arith.subf %322, %323 : vector<1x1xf32>
      %325 = arith.mulf %235, %318 : vector<1x1xf32>
      %326 = arith.subf %324, %325 : vector<1x1xf32>
      %327 = arith.divf %326, %242 : vector<1x1xf32>
      %cst_49 = arith.constant 0.000000e+00 : f32
      %328 = vector.broadcast %cst_49 : f32 to vector<1x1xf32>
      %329 = arith.subf %328, %187 : vector<1x1xf32>
      %330 = arith.mulf %243, %306 : vector<1x1xf32>
      %331 = arith.subf %329, %330 : vector<1x1xf32>
      %332 = arith.mulf %246, %311 : vector<1x1xf32>
      %333 = arith.subf %331, %332 : vector<1x1xf32>
      %334 = arith.mulf %251, %318 : vector<1x1xf32>
      %335 = arith.subf %333, %334 : vector<1x1xf32>
      %336 = arith.mulf %258, %327 : vector<1x1xf32>
      %337 = arith.subf %335, %336 : vector<1x1xf32>
      %338 = arith.divf %337, %267 : vector<1x1xf32>
      %cst_50 = arith.constant 0.000000e+00 : f32
      %339 = vector.broadcast %cst_50 : f32 to vector<1x1xf32>
      %340 = arith.subf %339, %188 : vector<1x1xf32>
      %341 = arith.mulf %268, %306 : vector<1x1xf32>
      %342 = arith.subf %340, %341 : vector<1x1xf32>
      %343 = arith.mulf %271, %311 : vector<1x1xf32>
      %344 = arith.subf %342, %343 : vector<1x1xf32>
      %345 = arith.mulf %276, %318 : vector<1x1xf32>
      %346 = arith.subf %344, %345 : vector<1x1xf32>
      %347 = arith.mulf %283, %327 : vector<1x1xf32>
      %348 = arith.subf %346, %347 : vector<1x1xf32>
      %349 = arith.mulf %292, %338 : vector<1x1xf32>
      %350 = arith.subf %348, %349 : vector<1x1xf32>
      %351 = arith.divf %350, %303 : vector<1x1xf32>
      %352 = arith.divf %351, %303 : vector<1x1xf32>
      %353 = arith.mulf %292, %352 : vector<1x1xf32>
      %354 = arith.subf %338, %353 : vector<1x1xf32>
      %355 = arith.divf %354, %267 : vector<1x1xf32>
      %356 = arith.mulf %258, %355 : vector<1x1xf32>
      %357 = arith.subf %327, %356 : vector<1x1xf32>
      %358 = arith.mulf %283, %352 : vector<1x1xf32>
      %359 = arith.subf %357, %358 : vector<1x1xf32>
      %360 = arith.divf %359, %242 : vector<1x1xf32>
      %361 = arith.mulf %235, %360 : vector<1x1xf32>
      %362 = arith.subf %318, %361 : vector<1x1xf32>
      %363 = arith.mulf %251, %355 : vector<1x1xf32>
      %364 = arith.subf %362, %363 : vector<1x1xf32>
      %365 = arith.mulf %276, %352 : vector<1x1xf32>
      %366 = arith.subf %364, %365 : vector<1x1xf32>
      %367 = arith.divf %366, %226 : vector<1x1xf32>
      %368 = arith.mulf %221, %367 : vector<1x1xf32>
      %369 = arith.subf %311, %368 : vector<1x1xf32>
      %370 = arith.mulf %230, %360 : vector<1x1xf32>
      %371 = arith.subf %369, %370 : vector<1x1xf32>
      %372 = arith.mulf %246, %355 : vector<1x1xf32>
      %373 = arith.subf %371, %372 : vector<1x1xf32>
      %374 = arith.mulf %271, %352 : vector<1x1xf32>
      %375 = arith.subf %373, %374 : vector<1x1xf32>
      %376 = arith.divf %375, %217 : vector<1x1xf32>
      %377 = arith.mulf %214, %376 : vector<1x1xf32>
      %378 = arith.subf %306, %377 : vector<1x1xf32>
      %379 = arith.mulf %218, %367 : vector<1x1xf32>
      %380 = arith.subf %378, %379 : vector<1x1xf32>
      %381 = arith.mulf %227, %360 : vector<1x1xf32>
      %382 = arith.subf %380, %381 : vector<1x1xf32>
      %383 = arith.mulf %243, %355 : vector<1x1xf32>
      %384 = arith.subf %382, %383 : vector<1x1xf32>
      %385 = arith.mulf %268, %352 : vector<1x1xf32>
      %386 = arith.subf %384, %385 : vector<1x1xf32>
      %387 = arith.divf %386, %213 : vector<1x1xf32>
      %388 = arith.mulf %360, %360 : vector<1x1xf32>
      %389 = arith.mulf %355, %355 : vector<1x1xf32>
      %390 = arith.addf %388, %389 : vector<1x1xf32>
      %391 = arith.mulf %352, %352 : vector<1x1xf32>
      %392 = arith.addf %390, %391 : vector<1x1xf32>
      %cst_51 = arith.constant -8.22063508E-18 : f32
      %393 = vector.broadcast %cst_51 : f32 to vector<1x1xf32>
      %394 = arith.mulf %392, %393 : vector<1x1xf32>
      %cst_52 = arith.constant 2.81145736E-15 : f32
      %395 = vector.broadcast %cst_52 : f32 to vector<1x1xf32>
      %396 = arith.addf %395, %394 : vector<1x1xf32>
      %397 = arith.mulf %392, %396 : vector<1x1xf32>
      %cst_53 = arith.constant -7.6471636E-13 : f32
      %398 = vector.broadcast %cst_53 : f32 to vector<1x1xf32>
      %399 = arith.addf %398, %397 : vector<1x1xf32>
      %400 = arith.mulf %392, %399 : vector<1x1xf32>
      %cst_54 = arith.constant 1.60590444E-10 : f32
      %401 = vector.broadcast %cst_54 : f32 to vector<1x1xf32>
      %402 = arith.addf %401, %400 : vector<1x1xf32>
      %403 = arith.mulf %392, %402 : vector<1x1xf32>
      %cst_55 = arith.constant -2.50521079E-8 : f32
      %404 = vector.broadcast %cst_55 : f32 to vector<1x1xf32>
      %405 = arith.addf %404, %403 : vector<1x1xf32>
      %406 = arith.mulf %392, %405 : vector<1x1xf32>
      %cst_56 = arith.constant 2.75573188E-6 : f32
      %407 = vector.broadcast %cst_56 : f32 to vector<1x1xf32>
      %408 = arith.addf %407, %406 : vector<1x1xf32>
      %409 = arith.mulf %392, %408 : vector<1x1xf32>
      %cst_57 = arith.constant -1.98412701E-4 : f32
      %410 = vector.broadcast %cst_57 : f32 to vector<1x1xf32>
      %411 = arith.addf %410, %409 : vector<1x1xf32>
      %412 = arith.mulf %392, %411 : vector<1x1xf32>
      %cst_58 = arith.constant 0.00833333377 : f32
      %413 = vector.broadcast %cst_58 : f32 to vector<1x1xf32>
      %414 = arith.addf %413, %412 : vector<1x1xf32>
      %415 = arith.mulf %392, %414 : vector<1x1xf32>
      %cst_59 = arith.constant -0.166666672 : f32
      %416 = vector.broadcast %cst_59 : f32 to vector<1x1xf32>
      %417 = arith.addf %416, %415 : vector<1x1xf32>
      %418 = arith.mulf %392, %417 : vector<1x1xf32>
      %cst_60 = arith.constant 1.000000e+00 : f32
      %419 = vector.broadcast %cst_60 : f32 to vector<1x1xf32>
      %420 = arith.addf %419, %418 : vector<1x1xf32>
      %cst_61 = arith.constant -4.11031759E-19 : f32
      %421 = vector.broadcast %cst_61 : f32 to vector<1x1xf32>
      %422 = arith.mulf %392, %421 : vector<1x1xf32>
      %cst_62 = arith.constant 1.56192068E-16 : f32
      %423 = vector.broadcast %cst_62 : f32 to vector<1x1xf32>
      %424 = arith.addf %423, %422 : vector<1x1xf32>
      %425 = arith.mulf %392, %424 : vector<1x1xf32>
      %cst_63 = arith.constant -4.77947726E-14 : f32
      %426 = vector.broadcast %cst_63 : f32 to vector<1x1xf32>
      %427 = arith.addf %426, %425 : vector<1x1xf32>
      %428 = arith.mulf %392, %427 : vector<1x1xf32>
      %cst_64 = arith.constant 1.14707454E-11 : f32
      %429 = vector.broadcast %cst_64 : f32 to vector<1x1xf32>
      %430 = arith.addf %429, %428 : vector<1x1xf32>
      %431 = arith.mulf %392, %430 : vector<1x1xf32>
      %cst_65 = arith.constant -2.08767559E-9 : f32
      %432 = vector.broadcast %cst_65 : f32 to vector<1x1xf32>
      %433 = arith.addf %432, %431 : vector<1x1xf32>
      %434 = arith.mulf %392, %433 : vector<1x1xf32>
      %cst_66 = arith.constant 2.755732E-7 : f32
      %435 = vector.broadcast %cst_66 : f32 to vector<1x1xf32>
      %436 = arith.addf %435, %434 : vector<1x1xf32>
      %437 = arith.mulf %392, %436 : vector<1x1xf32>
      %cst_67 = arith.constant -2.48015876E-5 : f32
      %438 = vector.broadcast %cst_67 : f32 to vector<1x1xf32>
      %439 = arith.addf %438, %437 : vector<1x1xf32>
      %440 = arith.mulf %392, %439 : vector<1x1xf32>
      %cst_68 = arith.constant 0.00138888892 : f32
      %441 = vector.broadcast %cst_68 : f32 to vector<1x1xf32>
      %442 = arith.addf %441, %440 : vector<1x1xf32>
      %443 = arith.mulf %392, %442 : vector<1x1xf32>
      %cst_69 = arith.constant -0.0416666679 : f32
      %444 = vector.broadcast %cst_69 : f32 to vector<1x1xf32>
      %445 = arith.addf %444, %443 : vector<1x1xf32>
      %446 = arith.mulf %392, %445 : vector<1x1xf32>
      %cst_70 = arith.constant 5.000000e-01 : f32
      %447 = vector.broadcast %cst_70 : f32 to vector<1x1xf32>
      %448 = arith.addf %447, %446 : vector<1x1xf32>
      %cst_71 = arith.constant -1.95729415E-20 : f32
      %449 = vector.broadcast %cst_71 : f32 to vector<1x1xf32>
      %450 = arith.mulf %392, %449 : vector<1x1xf32>
      %cst_72 = arith.constant 8.22063508E-18 : f32
      %451 = vector.broadcast %cst_72 : f32 to vector<1x1xf32>
      %452 = arith.addf %451, %450 : vector<1x1xf32>
      %453 = arith.mulf %392, %452 : vector<1x1xf32>
      %cst_73 = arith.constant -2.81145736E-15 : f32
      %454 = vector.broadcast %cst_73 : f32 to vector<1x1xf32>
      %455 = arith.addf %454, %453 : vector<1x1xf32>
      %456 = arith.mulf %392, %455 : vector<1x1xf32>
      %cst_74 = arith.constant 7.6471636E-13 : f32
      %457 = vector.broadcast %cst_74 : f32 to vector<1x1xf32>
      %458 = arith.addf %457, %456 : vector<1x1xf32>
      %459 = arith.mulf %392, %458 : vector<1x1xf32>
      %cst_75 = arith.constant -1.60590444E-10 : f32
      %460 = vector.broadcast %cst_75 : f32 to vector<1x1xf32>
      %461 = arith.addf %460, %459 : vector<1x1xf32>
      %462 = arith.mulf %392, %461 : vector<1x1xf32>
      %cst_76 = arith.constant 2.50521079E-8 : f32
      %463 = vector.broadcast %cst_76 : f32 to vector<1x1xf32>
      %464 = arith.addf %463, %462 : vector<1x1xf32>
      %465 = arith.mulf %392, %464 : vector<1x1xf32>
      %cst_77 = arith.constant -2.75573188E-6 : f32
      %466 = vector.broadcast %cst_77 : f32 to vector<1x1xf32>
      %467 = arith.addf %466, %465 : vector<1x1xf32>
      %468 = arith.mulf %392, %467 : vector<1x1xf32>
      %cst_78 = arith.constant 1.98412701E-4 : f32
      %469 = vector.broadcast %cst_78 : f32 to vector<1x1xf32>
      %470 = arith.addf %469, %468 : vector<1x1xf32>
      %471 = arith.mulf %392, %470 : vector<1x1xf32>
      %cst_79 = arith.constant -0.00833333377 : f32
      %472 = vector.broadcast %cst_79 : f32 to vector<1x1xf32>
      %473 = arith.addf %472, %471 : vector<1x1xf32>
      %474 = arith.mulf %392, %473 : vector<1x1xf32>
      %cst_80 = arith.constant 0.166666672 : f32
      %475 = vector.broadcast %cst_80 : f32 to vector<1x1xf32>
      %476 = arith.addf %475, %474 : vector<1x1xf32>
      %cst_81 = arith.constant 0.000000e+00 : f32
      %477 = vector.broadcast %cst_81 : f32 to vector<1x1xf32>
      %478 = arith.subf %477, %352 : vector<1x1xf32>
      %cst_82 = arith.constant 0.000000e+00 : f32
      %479 = vector.broadcast %cst_82 : f32 to vector<1x1xf32>
      %480 = arith.subf %479, %360 : vector<1x1xf32>
      %cst_83 = arith.constant 0.000000e+00 : f32
      %481 = vector.broadcast %cst_83 : f32 to vector<1x1xf32>
      %482 = arith.subf %481, %355 : vector<1x1xf32>
      %483 = arith.mulf %360, %360 : vector<1x1xf32>
      %484 = arith.subf %483, %392 : vector<1x1xf32>
      %485 = arith.mulf %448, %484 : vector<1x1xf32>
      %cst_84 = arith.constant 1.000000e+00 : f32
      %486 = vector.broadcast %cst_84 : f32 to vector<1x1xf32>
      %487 = arith.addf %486, %485 : vector<1x1xf32>
      %488 = arith.mulf %360, %355 : vector<1x1xf32>
      %489 = arith.mulf %420, %478 : vector<1x1xf32>
      %490 = arith.mulf %448, %488 : vector<1x1xf32>
      %491 = arith.addf %489, %490 : vector<1x1xf32>
      %492 = arith.mulf %360, %352 : vector<1x1xf32>
      %493 = arith.mulf %420, %355 : vector<1x1xf32>
      %494 = arith.mulf %448, %492 : vector<1x1xf32>
      %495 = arith.addf %493, %494 : vector<1x1xf32>
      %496 = arith.mulf %355, %360 : vector<1x1xf32>
      %497 = arith.mulf %420, %352 : vector<1x1xf32>
      %498 = arith.mulf %448, %496 : vector<1x1xf32>
      %499 = arith.addf %497, %498 : vector<1x1xf32>
      %500 = arith.mulf %355, %355 : vector<1x1xf32>
      %501 = arith.subf %500, %392 : vector<1x1xf32>
      %502 = arith.mulf %448, %501 : vector<1x1xf32>
      %cst_85 = arith.constant 1.000000e+00 : f32
      %503 = vector.broadcast %cst_85 : f32 to vector<1x1xf32>
      %504 = arith.addf %503, %502 : vector<1x1xf32>
      %505 = arith.mulf %355, %352 : vector<1x1xf32>
      %506 = arith.mulf %420, %480 : vector<1x1xf32>
      %507 = arith.mulf %448, %505 : vector<1x1xf32>
      %508 = arith.addf %506, %507 : vector<1x1xf32>
      %509 = arith.mulf %352, %360 : vector<1x1xf32>
      %510 = arith.mulf %420, %482 : vector<1x1xf32>
      %511 = arith.mulf %448, %509 : vector<1x1xf32>
      %512 = arith.addf %510, %511 : vector<1x1xf32>
      %513 = arith.mulf %352, %355 : vector<1x1xf32>
      %514 = arith.mulf %420, %360 : vector<1x1xf32>
      %515 = arith.mulf %448, %513 : vector<1x1xf32>
      %516 = arith.addf %514, %515 : vector<1x1xf32>
      %517 = arith.mulf %352, %352 : vector<1x1xf32>
      %518 = arith.subf %517, %392 : vector<1x1xf32>
      %519 = arith.mulf %448, %518 : vector<1x1xf32>
      %cst_86 = arith.constant 1.000000e+00 : f32
      %520 = vector.broadcast %cst_86 : f32 to vector<1x1xf32>
      %521 = arith.addf %520, %519 : vector<1x1xf32>
      %522 = arith.mulf %360, %360 : vector<1x1xf32>
      %523 = arith.subf %522, %392 : vector<1x1xf32>
      %524 = arith.mulf %476, %523 : vector<1x1xf32>
      %cst_87 = arith.constant 1.000000e+00 : f32
      %525 = vector.broadcast %cst_87 : f32 to vector<1x1xf32>
      %526 = arith.addf %525, %524 : vector<1x1xf32>
      %527 = arith.mulf %360, %355 : vector<1x1xf32>
      %528 = arith.mulf %448, %478 : vector<1x1xf32>
      %529 = arith.mulf %476, %527 : vector<1x1xf32>
      %530 = arith.addf %528, %529 : vector<1x1xf32>
      %531 = arith.mulf %360, %352 : vector<1x1xf32>
      %532 = arith.mulf %448, %355 : vector<1x1xf32>
      %533 = arith.mulf %476, %531 : vector<1x1xf32>
      %534 = arith.addf %532, %533 : vector<1x1xf32>
      %535 = arith.mulf %355, %360 : vector<1x1xf32>
      %536 = arith.mulf %448, %352 : vector<1x1xf32>
      %537 = arith.mulf %476, %535 : vector<1x1xf32>
      %538 = arith.addf %536, %537 : vector<1x1xf32>
      %539 = arith.mulf %355, %355 : vector<1x1xf32>
      %540 = arith.subf %539, %392 : vector<1x1xf32>
      %541 = arith.mulf %476, %540 : vector<1x1xf32>
      %cst_88 = arith.constant 1.000000e+00 : f32
      %542 = vector.broadcast %cst_88 : f32 to vector<1x1xf32>
      %543 = arith.addf %542, %541 : vector<1x1xf32>
      %544 = arith.mulf %355, %352 : vector<1x1xf32>
      %545 = arith.mulf %448, %480 : vector<1x1xf32>
      %546 = arith.mulf %476, %544 : vector<1x1xf32>
      %547 = arith.addf %545, %546 : vector<1x1xf32>
      %548 = arith.mulf %352, %360 : vector<1x1xf32>
      %549 = arith.mulf %448, %482 : vector<1x1xf32>
      %550 = arith.mulf %476, %548 : vector<1x1xf32>
      %551 = arith.addf %549, %550 : vector<1x1xf32>
      %552 = arith.mulf %352, %355 : vector<1x1xf32>
      %553 = arith.mulf %448, %360 : vector<1x1xf32>
      %554 = arith.mulf %476, %552 : vector<1x1xf32>
      %555 = arith.addf %553, %554 : vector<1x1xf32>
      %556 = arith.mulf %352, %352 : vector<1x1xf32>
      %557 = arith.subf %556, %392 : vector<1x1xf32>
      %558 = arith.mulf %476, %557 : vector<1x1xf32>
      %cst_89 = arith.constant 1.000000e+00 : f32
      %559 = vector.broadcast %cst_89 : f32 to vector<1x1xf32>
      %560 = arith.addf %559, %558 : vector<1x1xf32>
      %561 = arith.mulf %526, %387 : vector<1x1xf32>
      %562 = arith.mulf %530, %376 : vector<1x1xf32>
      %563 = arith.addf %561, %562 : vector<1x1xf32>
      %564 = arith.mulf %534, %367 : vector<1x1xf32>
      %565 = arith.addf %563, %564 : vector<1x1xf32>
      %566 = arith.mulf %538, %387 : vector<1x1xf32>
      %567 = arith.mulf %543, %376 : vector<1x1xf32>
      %568 = arith.addf %566, %567 : vector<1x1xf32>
      %569 = arith.mulf %547, %367 : vector<1x1xf32>
      %570 = arith.addf %568, %569 : vector<1x1xf32>
      %571 = arith.mulf %551, %387 : vector<1x1xf32>
      %572 = arith.mulf %555, %376 : vector<1x1xf32>
      %573 = arith.addf %571, %572 : vector<1x1xf32>
      %574 = arith.mulf %560, %367 : vector<1x1xf32>
      %575 = arith.addf %573, %574 : vector<1x1xf32>
      %576 = arith.mulf %487, %arg8 : vector<1x1xf32>
      %577 = arith.mulf %491, %arg11 : vector<1x1xf32>
      %578 = arith.addf %576, %577 : vector<1x1xf32>
      %579 = arith.mulf %495, %arg14 : vector<1x1xf32>
      %580 = arith.addf %578, %579 : vector<1x1xf32>
      %581 = arith.mulf %487, %arg9 : vector<1x1xf32>
      %582 = arith.mulf %491, %arg12 : vector<1x1xf32>
      %583 = arith.addf %581, %582 : vector<1x1xf32>
      %584 = arith.mulf %495, %arg15 : vector<1x1xf32>
      %585 = arith.addf %583, %584 : vector<1x1xf32>
      %586 = arith.mulf %487, %arg10 : vector<1x1xf32>
      %587 = arith.mulf %491, %arg13 : vector<1x1xf32>
      %588 = arith.addf %586, %587 : vector<1x1xf32>
      %589 = arith.mulf %495, %arg16 : vector<1x1xf32>
      %590 = arith.addf %588, %589 : vector<1x1xf32>
      %591 = arith.mulf %499, %arg8 : vector<1x1xf32>
      %592 = arith.mulf %504, %arg11 : vector<1x1xf32>
      %593 = arith.addf %591, %592 : vector<1x1xf32>
      %594 = arith.mulf %508, %arg14 : vector<1x1xf32>
      %595 = arith.addf %593, %594 : vector<1x1xf32>
      %596 = arith.mulf %499, %arg9 : vector<1x1xf32>
      %597 = arith.mulf %504, %arg12 : vector<1x1xf32>
      %598 = arith.addf %596, %597 : vector<1x1xf32>
      %599 = arith.mulf %508, %arg15 : vector<1x1xf32>
      %600 = arith.addf %598, %599 : vector<1x1xf32>
      %601 = arith.mulf %499, %arg10 : vector<1x1xf32>
      %602 = arith.mulf %504, %arg13 : vector<1x1xf32>
      %603 = arith.addf %601, %602 : vector<1x1xf32>
      %604 = arith.mulf %508, %arg16 : vector<1x1xf32>
      %605 = arith.addf %603, %604 : vector<1x1xf32>
      %606 = arith.mulf %512, %arg8 : vector<1x1xf32>
      %607 = arith.mulf %516, %arg11 : vector<1x1xf32>
      %608 = arith.addf %606, %607 : vector<1x1xf32>
      %609 = arith.mulf %521, %arg14 : vector<1x1xf32>
      %610 = arith.addf %608, %609 : vector<1x1xf32>
      %611 = arith.mulf %512, %arg9 : vector<1x1xf32>
      %612 = arith.mulf %516, %arg12 : vector<1x1xf32>
      %613 = arith.addf %611, %612 : vector<1x1xf32>
      %614 = arith.mulf %521, %arg15 : vector<1x1xf32>
      %615 = arith.addf %613, %614 : vector<1x1xf32>
      %616 = arith.mulf %512, %arg10 : vector<1x1xf32>
      %617 = arith.mulf %516, %arg13 : vector<1x1xf32>
      %618 = arith.addf %616, %617 : vector<1x1xf32>
      %619 = arith.mulf %521, %arg16 : vector<1x1xf32>
      %620 = arith.addf %618, %619 : vector<1x1xf32>
      %621 = arith.mulf %487, %arg17 : vector<1x1xf32>
      %622 = arith.mulf %491, %arg18 : vector<1x1xf32>
      %623 = arith.addf %621, %622 : vector<1x1xf32>
      %624 = arith.mulf %495, %arg19 : vector<1x1xf32>
      %625 = arith.addf %623, %624 : vector<1x1xf32>
      %626 = arith.addf %625, %565 : vector<1x1xf32>
      %627 = arith.mulf %499, %arg17 : vector<1x1xf32>
      %628 = arith.mulf %504, %arg18 : vector<1x1xf32>
      %629 = arith.addf %627, %628 : vector<1x1xf32>
      %630 = arith.mulf %508, %arg19 : vector<1x1xf32>
      %631 = arith.addf %629, %630 : vector<1x1xf32>
      %632 = arith.addf %631, %570 : vector<1x1xf32>
      %633 = arith.mulf %512, %arg17 : vector<1x1xf32>
      %634 = arith.mulf %516, %arg18 : vector<1x1xf32>
      %635 = arith.addf %633, %634 : vector<1x1xf32>
      %636 = arith.mulf %521, %arg19 : vector<1x1xf32>
      %637 = arith.addf %635, %636 : vector<1x1xf32>
      %638 = arith.addf %637, %575 : vector<1x1xf32>
      scf.yield %580, %585, %590, %595, %600, %605, %610, %615, %620, %626, %632, %638 : vector<1x1xf32>, vector<1x1xf32>, vector<1x1xf32>, vector<1x1xf32>, vector<1x1xf32>, vector<1x1xf32>, vector<1x1xf32>, vector<1x1xf32>, vector<1x1xf32>, vector<1x1xf32>, vector<1x1xf32>, vector<1x1xf32>
    }
    %16 = tpu.concatenate %15#0, %15#1, %15#2, %15#3, %15#4, %15#5, %15#6, %15#7, %15#8, %15#9, %15#10, %15#11 in 0 : vector<1x1xf32>, vector<1x1xf32>, vector<1x1xf32>, vector<1x1xf32>, vector<1x1xf32>, vector<1x1xf32>, vector<1x1xf32>, vector<1x1xf32>, vector<1x1xf32>, vector<1x1xf32>, vector<1x1xf32>, vector<1x1xf32> -> vector<12x1xf32>
    %c0_2 = arith.constant 0 : index
    %c0_3 = arith.constant 0 : index
    %c0_4 = arith.constant 0 : index
    %17 = vector.load %arg6[%c0_2, %c0_3, %c0_4] : memref<1x12x1xf32, #tpu.memory_space<vmem>>, vector<1x12x1xf32>
    %18 = vector.shape_cast %17 : vector<1x12x1xf32> to vector<12x1xf32>
    %19 = vector.shape_cast %16 : vector<12x1xf32> to vector<1x12x1xf32>
    tpu.vector_store %arg6[%c0_2, %c0_3, %c0_4], %19 {strides = array<i32>} : memref<1x12x1xf32, #tpu.memory_space<vmem>>, vector<1x12x1xf32>,
    return
  }
  func.func @transform_0(%arg0: i32) -> (i32, i32, i32) {
    %c0_i32 = arith.constant 0 : i32
    %c0_i32_0 = arith.constant 0 : i32
    %c0_i32_1 = arith.constant 0 : i32
    return %arg0, %c0_i32, %c0_i32_0 : i32, i32, i32
  }
  func.func @transform_1(%arg0: i32) -> (i32, i32, i32) {
    %c0_i32 = arith.constant 0 : i32
    %c0_i32_0 = arith.constant 0 : i32
    %c0_i32_1 = arith.constant 0 : i32
    return %arg0, %c0_i32, %c0_i32_0 : i32, i32, i32
  }
  func.func @transform_2(%arg0: i32) -> (i32, i32, i32) {
    %c0_i32 = arith.constant 0 : i32
    %c0_i32_0 = arith.constant 0 : i32
    %c0_i32_1 = arith.constant 0 : i32
    return %arg0, %c0_i32, %c0_i32_0 : i32, i32, i32
  }
  func.func @transform_3(%arg0: i32) -> (i32, i32, i32) {
    %c0_i32 = arith.constant 0 : i32
    %c0_i32_0 = arith.constant 0 : i32
    %c0_i32_1 = arith.constant 0 : i32
    return %arg0, %c0_i32, %c0_i32_0 : i32, i32, i32
  }
  func.func @transform_4(%arg0: i32) -> (i32, i32, i32) {
    %c0_i32 = arith.constant 0 : i32
    %c0_i32_0 = arith.constant 0 : i32
    %c0_i32_1 = arith.constant 0 : i32
    return %arg0, %c0_i32, %c0_i32_0 : i32, i32, i32
  }
  func.func @transform_5(%arg0: i32) -> (i32, i32, i32) {
    %c0_i32 = arith.constant 0 : i32
    %c0_i32_0 = arith.constant 0 : i32
    %c0_i32_1 = arith.constant 0 : i32
    return %arg0, %c0_i32, %c0_i32_0 : i32, i32, i32
  }
}

</mosaic_0001>

<llo_original>
// kernel: lieopt_pose_forward.1
$region0: #{lieopt_pose_forward.1}
  #allocation0 [shape = 'u32[]', space=smem, size = 0x4, offset = 0x4, fixed_abs, tag = 'smem constant byte address 0x4 - core index']
  #allocation1 [shape = 'u32[144,128]{1,0:T(1,128)}', space=vmem, size = 0x12000, scoped, tag = 'internal scratch']
  %s0 = inlined_call_operand.vmem [shape: f32[2,1,12], index: 0, kind: input, shape index: {}]
  %s1 = inlined_call_operand.vmem [shape: f32[2,3,128], index: 1, kind: input, shape index: {}]
  %s2 = inlined_call_operand.vmem [shape: f32[2,3,128], index: 2, kind: input, shape index: {}]
  %s3 = inlined_call_operand.vmem [shape: f32[2,1,128], index: 3, kind: input, shape index: {}]
  %s4 = inlined_call_operand.vmem [shape: f32[2,9,128], index: 4, kind: input, shape index: {}]
  %s5 = inlined_call_operand.vmem [shape: f32[2,12,1], index: 5, kind: output, shape index: {}]
  %s6 = sld [smem:[#allocation0]]
  $region60: #{lieopt_pose_forward.1} parent=0
    _
  %s8 = ssub.s32 1, %s6
  %s9 = scalar_select 0, %s8, %s6
  loop: start=0, step=1, limit=4
  $region2: #{lieopt_pose_forward.1} parent=0 // loop_pre_header
    _
  $region3: #{lieopt_pose_forward.1} parent=0 // loop_header
    %s11 = sphi 0, %s15
    %p12 = scmp.ge.s32.totalorder %s11, 4
    %s21 = sphi 0, %s23
    %s24 = sphi 0, %s21
    %s25 = sphi 0, %s24
    %s41 = sphi 0, %s25
    %s47 = sphi 0, %s49
    %s50 = sphi 0, %s47
    %s51 = sphi 0, %s50
    %s67 = sphi 0, %s51
    %s73 = sphi 0, %s75
    %s76 = sphi 0, %s73
    %s77 = sphi 0, %s76
    %s93 = sphi 0, %s77
    %s99 = sphi 0, %s101
    %s102 = sphi 0, %s99
    %s103 = sphi 0, %s102
    %s119 = sphi 0, %s103
    %s125 = sphi 0, %s127
    %s128 = sphi 0, %s125
    %s129 = sphi 0, %s128
    %s145 = sphi 0, %s129
    %s151 = sphi 0, %s153
    %s154 = sphi 0, %s151
    %s155 = sphi 0, %s154
    %s171 = sphi 0, %s155
  $region4: #{lieopt_pose_forward.1} parent=0 // loop_header_branch
    %14 = sbr.rel (%p12) target = $region8
  $region5: #{lieopt_pose_forward.1} parent=0 // loop_body
    %s16 = ssub.s32 %s11, 1
    %s17 = ssub.s32 %s11, 2
    %s18 = sadd.s32 %s11, 1
    %s19 = ssub.s32 %s11, %s18
    %p20 = scmp.eq.s32.totalorder %s19, 0
    %s22 = sadd.s32 %s21, 1
    %s23 = scalar_select %p20, %s21, %s22
    %p26 = pneg %p20
    %p27 = scmp.eq.s32.totalorder %s11, 1
    %p28 = por %p26, %p27
    %p29 = scmp.ne.s32.totalorder %s21, %s24
    %p30 = scmp.eq.s32.totalorder %s11, 0
    %p31 = por %p29, %p30
    %p32 = scmp.ne.s32.totalorder %s21, %s24
    %p33 = scmp.eq.s32.totalorder %s16, 1
    %p34 = por %p32, %p33
    %p35 = scmp.ne.s32.totalorder %s24, %s25
    %p36 = scmp.eq.s32.totalorder %s16, 0
    %p37 = por %p35, %p36
    %p38 = scmp.ne.s32.totalorder %s24, %s25
    %p39 = scmp.eq.s32.totalorder %s17, 1
    %p40 = por %p38, %p39
    %p42 = scmp.ne.s32.totalorder %s25, %s41
    %p43 = scmp.eq.s32.totalorder %s17, 0
    %p44 = por %p42, %p43
    %s45 = ssub.s32 %s11, %s18
    %p46 = scmp.eq.s32.totalorder %s45, 0
    %s48 = sadd.s32 %s47, 1
    %s49 = scalar_select %p46, %s47, %s48
    %p52 = pneg %p46
    %p53 = scmp.eq.s32.totalorder %s11, 1
    %p54 = por %p52, %p53
    %p55 = scmp.ne.s32.totalorder %s47, %s50
    %p56 = scmp.eq.s32.totalorder %s11, 0
    %p57 = por %p55, %p56
    %p58 = scmp.ne.s32.totalorder %s47, %s50
    %p59 = scmp.eq.s32.totalorder %s16, 1
    %p60 = por %p58, %p59
    %p61 = scmp.ne.s32.totalorder %s50, %s51
    %p62 = scmp.eq.s32.totalorder %s16, 0
    %p63 = por %p61, %p62
    %p64 = scmp.ne.s32.totalorder %s50, %s51
    %p65 = scmp.eq.s32.totalorder %s17, 1
    %p66 = por %p64, %p65
    %p68 = scmp.ne.s32.totalorder %s51, %s67
    %p69 = scmp.eq.s32.totalorder %s17, 0
    %p70 = por %p68, %p69
    %s71 = ssub.s32 %s11, %s18
    %p72 = scmp.eq.s32.totalorder %s71, 0
    %s74 = sadd.s32 %s73, 1
    %s75 = scalar_select %p72, %s73, %s74
    %p78 = pneg %p72
    %p79 = scmp.eq.s32.totalorder %s11, 1
    %p80 = por %p78, %p79
    %p81 = scmp.ne.s32.totalorder %s73, %s76
    %p82 = scmp.eq.s32.totalorder %s11, 0
    %p83 = por %p81, %p82
    %p84 = scmp.ne.s32.totalorder %s73, %s76
    %p85 = scmp.eq.s32.totalorder %s16, 1
    %p86 = por %p84, %p85
    %p87 = scmp.ne.s32.totalorder %s76, %s77
    %p88 = scmp.eq.s32.totalorder %s16, 0
    %p89 = por %p87, %p88
    %p90 = scmp.ne.s32.totalorder %s76, %s77
    %p91 = scmp.eq.s32.totalorder %s17, 1
    %p92 = por %p90, %p91
    %p94 = scmp.ne.s32.totalorder %s77, %s93
    %p95 = scmp.eq.s32.totalorder %s17, 0
    %p96 = por %p94, %p95
    %s97 = ssub.s32 %s11, %s18
    %p98 = scmp.eq.s32.totalorder %s97, 0
    %s100 = sadd.s32 %s99, 1
    %s101 = scalar_select %p98, %s99, %s100
    %p104 = pneg %p98
    %p105 = scmp.eq.s32.totalorder %s11, 1
    %p106 = por %p104, %p105
    %p107 = scmp.ne.s32.totalorder %s99, %s102
    %p108 = scmp.eq.s32.totalorder %s11, 0
    %p109 = por %p107, %p108
    %p110 = scmp.ne.s32.totalorder %s99, %s102
    %p111 = scmp.eq.s32.totalorder %s16, 1
    %p112 = por %p110, %p111
    %p113 = scmp.ne.s32.totalorder %s102, %s103
    %p114 = scmp.eq.s32.totalorder %s16, 0
    %p115 = por %p113, %p114
    %p116 = scmp.ne.s32.totalorder %s102, %s103
    %p117 = scmp.eq.s32.totalorder %s17, 1
    %p118 = por %p116, %p117
    %p120 = scmp.ne.s32.totalorder %s103, %s119
    %p121 = scmp.eq.s32.totalorder %s17, 0
    %p122 = por %p120, %p121
    %s123 = ssub.s32 %s11, %s18
    %p124 = scmp.eq.s32.totalorder %s123, 0
    %s126 = sadd.s32 %s125, 1
    %s127 = scalar_select %p124, %s125, %s126
    %p130 = pneg %p124
    %p131 = scmp.eq.s32.totalorder %s11, 1
    %p132 = por %p130, %p131
    %p133 = scmp.ne.s32.totalorder %s125, %s128
    %p134 = scmp.eq.s32.totalorder %s11, 0
    %p135 = por %p133, %p134
    %p136 = scmp.ne.s32.totalorder %s125, %s128
    %p137 = scmp.eq.s32.totalorder %s16, 1
    %p138 = por %p136, %p137
    %p139 = scmp.ne.s32.totalorder %s128, %s129
    %p140 = scmp.eq.s32.totalorder %s16, 0
    %p141 = por %p139, %p140
    %p142 = scmp.ne.s32.totalorder %s128, %s129
    %p143 = scmp.eq.s32.totalorder %s17, 1
    %p144 = por %p142, %p143
    %p146 = scmp.ne.s32.totalorder %s129, %s145
    %p147 = scmp.eq.s32.totalorder %s17, 0
    %p148 = por %p146, %p147
    %s149 = ssub.s32 %s11, %s18
    %p150 = scmp.eq.s32.totalorder %s149, 0
    %s152 = sadd.s32 %s151, 1
    %s153 = scalar_select %p150, %s151, %s152
    %p156 = pneg %p150
    %p157 = scmp.eq.s32.totalorder %s11, 1
    %p158 = por %p156, %p157
    %p159 = scmp.ne.s32.totalorder %s151, %s154
    %p160 = scmp.eq.s32.totalorder %s11, 0
    %p161 = por %p159, %p160
    %p162 = scmp.ne.s32.totalorder %s151, %s154
    %p163 = scmp.eq.s32.totalorder %s16, 1
    %p164 = por %p162, %p163
    %p165 = scmp.ne.s32.totalorder %s154, %s155
    %p166 = scmp.eq.s32.totalorder %s16, 0
    %p167 = por %p165, %p166
    %p168 = scmp.ne.s32.totalorder %s154, %s155
    %p169 = scmp.eq.s32.totalorder %s17, 1
    %p170 = por %p168, %p169
    %p172 = scmp.ne.s32.totalorder %s155, %s171
    %p173 = scmp.eq.s32.totalorder %s17, 0
    %p174 = por %p172, %p173
    %p175 = scmp.le.s32.totalorder 1, %s11
    %p176 = scmp.lt.s32.totalorder %s11, 3
    %p177 = pnand %p175, %p176
    %p178 = pneg %p177
    // Predicated region
    $region9: #{lieopt_pose_forward.1} parent=5 // pred_check
      _
    $region10: #{lieopt_pose_forward.1} parent=5 // pred_check_branch
      %180 = sbr.rel (%p177) target = $region12
    $region11: #{lieopt_pose_forward.1} parent=5 // pred_region
      %s181 = ssub.s32 %s11, 1
    $region12: #{lieopt_pose_forward.1} parent=5 // pred_fallthru
      _
    %p182 = scmp.lt.s32.totalorder %s11, 2
    // Predicated region
    $region13: #{lieopt_pose_forward.1} parent=5 // pred_check
      %p183 = pneg %p182
    $region14: #{lieopt_pose_forward.1} parent=5 // pred_check_branch
      %185 = sbr.rel (%p183) target = $region16
    $region15: #{lieopt_pose_forward.1} parent=5 // pred_region
      // Predicated region
      $region17: #{lieopt_pose_forward.1} parent=15 // pred_check
        %p186 = pneg %p31
      $region18: #{lieopt_pose_forward.1} parent=15 // pred_check_branch
        %188 = sbr.rel (%p186) target = $region20
      $region19: #{lieopt_pose_forward.1} parent=15 // pred_region
        %p189 = scmp.lt.s32.totalorder %s11, 1
        %s190 = scalar_select %p189, %s11, 1
        %s191 = scalar_lea.vmem %s0, %s190
      $region20: #{lieopt_pose_forward.1} parent=15 // pred_fallthru
        _
      // Predicated region
      $region21: #{lieopt_pose_forward.1} parent=15 // pred_check
        %p192 = pneg %p57
      $region22: #{lieopt_pose_forward.1} parent=15 // pred_check_branch
        %194 = sbr.rel (%p192) target = $region24
      $region23: #{lieopt_pose_forward.1} parent=15 // pred_region
        %p195 = scmp.lt.s32.totalorder %s11, 1
        %s196 = scalar_select %p195, %s11, 1
        %s197 = smul.addr %s196, 4
        %s198 = scalar_lea.vmem %s1, %s197
      $region24: #{lieopt_pose_forward.1} parent=15 // pred_fallthru
        _
      // Predicated region
      $region25: #{lieopt_pose_forward.1} parent=15 // pred_check
        %p199 = pneg %p83
      $region26: #{lieopt_pose_forward.1} parent=15 // pred_check_branch
        %201 = sbr.rel (%p199) target = $region28
      $region27: #{lieopt_pose_forward.1} parent=15 // pred_region
        %p202 = scmp.lt.s32.totalorder %s11, 1
        %s203 = scalar_select %p202, %s11, 1
        %s204 = smul.addr %s203, 4
        %s205 = scalar_lea.vmem %s2, %s204
      $region28: #{lieopt_pose_forward.1} parent=15 // pred_fallthru
        _
      // Predicated region
      $region29: #{lieopt_pose_forward.1} parent=15 // pred_check
        %p206 = pneg %p109
      $region30: #{lieopt_pose_forward.1} parent=15 // pred_check_branch
        %208 = sbr.rel (%p206) target = $region32
      $region31: #{lieopt_pose_forward.1} parent=15 // pred_region
        %p209 = scmp.lt.s32.totalorder %s11, 1
        %s210 = scalar_select %p209, %s11, 1
        %s211 = scalar_lea.vmem %s3, %s210
      $region32: #{lieopt_pose_forward.1} parent=15 // pred_fallthru
        _
      // Predicated region
      $region33: #{lieopt_pose_forward.1} parent=15 // pred_check
        %p212 = pneg %p135
      $region34: #{lieopt_pose_forward.1} parent=15 // pred_check_branch
        %214 = sbr.rel (%p212) target = $region36
      $region35: #{lieopt_pose_forward.1} parent=15 // pred_region
        %p215 = scmp.lt.s32.totalorder %s11, 1
        %s216 = scalar_select %p215, %s11, 1
        %s217 = smul.addr %s216, 2
        %s218 = smul.addr %s217, 8
        %s219 = scalar_lea.vmem %s4, %s218
      $region36: #{lieopt_pose_forward.1} parent=15 // pred_fallthru
        _
    $region16: #{lieopt_pose_forward.1} parent=5 // pred_fallthru
      _
    %p220 = scmp.le.s32.totalorder 1, %s11
    %p221 = scmp.lt.s32.totalorder %s11, 3
    %p222 = pnand %p220, %p221
    %p223 = pneg %p222
    // Predicated region
    $region37: #{lieopt_pose_forward.1} parent=5 // pred_check
      _
    $region38: #{lieopt_pose_forward.1} parent=5 // pred_check_branch
      %225 = sbr.rel (%p222) target = $region40
    $region39: #{lieopt_pose_forward.1} parent=5 // pred_region
      %s226 = ssub.s32 %s11, 1
      %p227 = scmp.lt.s32.totalorder %s16, 1
      %s228 = scalar_select %p227, %s16, 1
      %s229 = scalar_lea.vmem %s0, %s228
      %p230 = pneg %p37
      %p231 = pneg %p34
      %p232 = scmp.lt.s32.totalorder %s16, 1
      %s233 = scalar_select %p232, %s16, 1
      %s234 = smul.addr %s233, 4
      %s235 = scalar_lea.vmem %s1, %s234
      %p236 = pneg %p63
      %p237 = pneg %p60
      %p238 = scmp.lt.s32.totalorder %s16, 1
      %s239 = scalar_select %p238, %s16, 1
      %s240 = smul.addr %s239, 4
      %s241 = scalar_lea.vmem %s2, %s240
      %p242 = pneg %p89
      %p243 = pneg %p86
      %p244 = scmp.lt.s32.totalorder %s16, 1
      %s245 = scalar_select %p244, %s16, 1
      %s246 = scalar_lea.vmem %s3, %s245
      %p247 = pneg %p115
      %p248 = pneg %p112
      %p249 = scmp.lt.s32.totalorder %s16, 1
      %s250 = scalar_select %p249, %s16, 1
      %s251 = smul.addr %s250, 2
      %s252 = smul.addr %s251, 8
      %s253 = scalar_lea.vmem %s4, %s252
      %p254 = pneg %p141
      %p255 = pneg %p138
      %p256 = pneg %p167
      %p257 = pneg %p164
      %p258 = scmp.lt.s32.totalorder %s16, 1
      %s259 = scalar_select %p258, %s16, 1
      %s260 = smul.addr %s259, 2
      %s261 = smul.addr %s260, 8
      %s262 = scalar_lea.vmem %s5, %s261
      %p263 = scmp.lt.s32.totalorder %s16, 1
      %s264 = scalar_select %p263, %s16, 1
      %s265 = scalar_lea.vmem %s0, %s264
      %p266 = scmp.lt.s32.totalorder %s16, 1
      %s267 = scalar_select %p266, %s16, 1
      %s268 = smul.addr %s267, 4
      %s269 = scalar_lea.vmem %s1, %s268
      %p270 = scmp.lt.s32.totalorder %s16, 1
      %s271 = scalar_select %p270, %s16, 1
      %s272 = smul.addr %s271, 4
      %s273 = scalar_lea.vmem %s2, %s272
      %p274 = scmp.lt.s32.totalorder %s16, 1
      %s275 = scalar_select %p274, %s16, 1
      %s276 = scalar_lea.vmem %s3, %s275
      %p277 = scmp.lt.s32.totalorder %s16, 1
      %s278 = scalar_select %p277, %s16, 1
      %s279 = smul.addr %s278, 2
      %s280 = smul.addr %s279, 8
      %s281 = scalar_lea.vmem %s4, %s280
      %p282 = scmp.lt.s32.totalorder %s16, 1
      %s283 = scalar_select %p282, %s16, 1
      %s284 = smul.addr %s283, 2
      %s285 = smul.addr %s284, 8
      %s286 = scalar_lea.vmem %s5, %s285
      %v287 = vld [vmem:[%s265] sm:$0x1]
      %v289 = vlaneseq
      %v290 = vshrl.u32 %v289, 7
      %v291 = vsub.s32 0, %v290
      %v292 = vrot.slane %v287, %v291
      %293 = vrot.lane.b32.xlu0 %v292, 127
      %v294 = vpop.permute.xlu0 %293
      %296 = vrot.lane.b32.xlu0 %v292, 126
      %v297 = vpop.permute.xlu0 %296
      %299 = vrot.lane.b32.xlu0 %v292, 125
      %v300 = vpop.permute.xlu0 %299
      %302 = vrot.lane.b32.xlu0 %v292, 124
      %v303 = vpop.permute.xlu0 %302
      %305 = vrot.lane.b32.xlu0 %v292, 123
      %v306 = vpop.permute.xlu0 %305
      %308 = vrot.lane.b32.xlu0 %v292, 122
      %v309 = vpop.permute.xlu0 %308
      %311 = vrot.lane.b32.xlu0 %v292, 121
      %v312 = vpop.permute.xlu0 %311
      %314 = vrot.lane.b32.xlu0 %v292, 120
      %v315 = vpop.permute.xlu0 %314
      %317 = vrot.lane.b32.xlu0 %v292, 119
      %v318 = vpop.permute.xlu0 %317
      %320 = vrot.lane.b32.xlu0 %v292, 118
      %v321 = vpop.permute.xlu0 %320
      %323 = vrot.lane.b32.xlu0 %v292, 117
      %v324 = vpop.permute.xlu0 %323
      loop: start=0, step=1, limit=50
      $region41: #{lieopt_pose_forward.1} parent=39 // loop_pre_header
        _
      $region42: #{lieopt_pose_forward.1} parent=39 // loop_header
        %s327 = sphi 0, %s331
        %p328 = scmp.ge.s32.totalorder %s327, 50
        %v332 = vphi %v287, %v1953
        %v333 = vphi %v294, %v1958
        %v334 = vphi %v297, %v1963
        %v335 = vphi %v300, %v1968
        %v336 = vphi %v303, %v1973
        %v337 = vphi %v306, %v1978
        %v338 = vphi %v309, %v1983
        %v339 = vphi %v312, %v1988
        %v340 = vphi %v315, %v1993
        %v341 = vphi %v318, %v1998
        %v342 = vphi %v321, %v2003
        %v343 = vphi %v324, %v2008
      $region43: #{lieopt_pose_forward.1} parent=39 // loop_header_branch
        %330 = sbr.rel (%p328) target = $region47
      $region44: #{lieopt_pose_forward.1} parent=39 // loop_body
        %v344 = vld [vmem:[%s269] sm:$0x7]
        %v345 = vld [vmem:[%s273] sm:$0x7]
        %v346 = vld [vmem:[%s276] sm:$0x1]
        %v347 = vld [vmem:[%s281] sm:$0xff]
        %v348 = vld [vmem:[%s281 + $0x8] sm:$0x1]
        %v349 = vmul.f32 %v346, %v346
        %v350 = vmul.f32 %v349, %v347
        %v353 = vunpack.c.l.s4 1966171168
        %v354 = vunpack.c.0.s8 %v353
        %v355 = vlaneseq
        %v356 = vshrl.u32 %v355, 7
        %v357 = vsub.s32 %v354, %v356
        %v358 = vrot.slane %v347, %v357
        %v359 = vcombine.high %v358, %v358
        %v361 = vunpack.c.l.s4 1966171168
        %v362 = vunpack.c.0.s8 %v361
        %v363 = vlaneseq
        %v364 = vshrl.u32 %v363, 7
        %v365 = vsub.s32 %v362, %v364
        %v366 = vrot.slane %v358, %v365
        %v368 = vunpack.c.l.s4 1966171168
        %v369 = vunpack.c.0.s8 %v368
        %v370 = vlaneseq
        %v371 = vshrl.u32 %v370, 7
        %v372 = vsub.s32 %v369, %v371
        %v373 = vrot.slane %v359, %v372
        %v375 = vmul.f32 %v349, %v373
        %v376 = vcombine.high %v366, %v366
        %v378 = vmul.f32 %v349, %v376
        %v379 = vcombine.high %v347, %v347
        %v381 = vunpack.c.l.s4 1966171168
        %v382 = vunpack.c.0.s8 %v381
        %v383 = vlaneseq
        %v384 = vshrl.u32 %v383, 7
        %v385 = vsub.s32 %v382, %v384
        %v386 = vrot.slane %v379, %v385
        %v388 = vunpack.c.l.s4 1966171168
        %v389 = vunpack.c.0.s8 %v388
        %v390 = vlaneseq
        %v391 = vshrl.u32 %v390, 7
        %v392 = vsub.s32 %v389, %v391
        %v393 = vrot.slane %v386, %v392
        %v395 = vmul.f32 %v349, %v393
        %v396 = vcombine.high %v386, %v386
        %v398 = vunpack.c.l.s4 1966171168
        %v399 = vunpack.c.0.s8 %v398
        %v400 = vlaneseq
        %v401 = vshrl.u32 %v400, 7
        %v402 = vsub.s32 %v399, %v401
        %v403 = vrot.slane %v396, %v402
        %v405 = vmul.f32 %v349, %v403
        %v406 = vmul.f32 %v349, %v348
        %408 = vset.pattern.permute.xlu0 0
        %409 = vperm.xlu0 %408, %v332
        %v410 = vpop.permute.xlu0 %409
        %v412 = vmul.f32 %v410, %v344
        %414 = vset.pattern.permute.xlu0 0
        %415 = vperm.xlu0 %414, %v333
        %v416 = vpop.permute.xlu0 %415
        %v419 = vrot.slane %v344, 1
        %v421 = vmul.f32 %v416, %v419
        %v422 = vadd.f32 %v412, %v421
        %424 = vset.pattern.permute.xlu0 0
        %425 = vperm.xlu0 %424, %v334
        %v426 = vpop.permute.xlu0 %425
        %v428 = vrot.slane %v344, 2
        %v430 = vmul.f32 %v426, %v428
        %v431 = vadd.f32 %v422, %v430
        %433 = vset.pattern.permute.xlu0 0
        %434 = vperm.xlu0 %433, %v341
        %v435 = vpop.permute.xlu0 %434
        %v437 = vadd.f32 %v431, %v435
        %439 = vset.pattern.permute.xlu0 0
        %440 = vperm.xlu0 %439, %v335
        %v441 = vpop.permute.xlu0 %440
        %v443 = vmul.f32 %v441, %v344
        %445 = vset.pattern.permute.xlu0 0
        %446 = vperm.xlu0 %445, %v336
        %v447 = vpop.permute.xlu0 %446
        %v449 = vmul.f32 %v447, %v419
        %v450 = vadd.f32 %v443, %v449
        %452 = vset.pattern.permute.xlu0 0
        %453 = vperm.xlu0 %452, %v337
        %v454 = vpop.permute.xlu0 %453
        %v456 = vmul.f32 %v454, %v428
        %v457 = vadd.f32 %v450, %v456
        %459 = vset.pattern.permute.xlu0 0
        %460 = vperm.xlu0 %459, %v342
        %v461 = vpop.permute.xlu0 %460
        %v463 = vadd.f32 %v457, %v461
        %465 = vset.pattern.permute.xlu0 0
        %466 = vperm.xlu0 %465, %v338
        %v467 = vpop.permute.xlu0 %466
        %v469 = vmul.f32 %v467, %v344
        %471 = vset.pattern.permute.xlu0 0
        %472 = vperm.xlu0 %471, %v339
        %v473 = vpop.permute.xlu0 %472
        %v475 = vmul.f32 %v473, %v419
        %v476 = vadd.f32 %v469, %v475
        %478 = vset.pattern.permute.xlu0 0
        %479 = vperm.xlu0 %478, %v340
        %v480 = vpop.permute.xlu0 %479
        %v482 = vmul.f32 %v480, %v428
        %v483 = vadd.f32 %v476, %v482
        %485 = vset.pattern.permute.xlu0 0
        %486 = vperm.xlu0 %485, %v343
        %v487 = vpop.permute.xlu0 %486
        %v489 = vadd.f32 %v483, %v487
        %v490 = vsub.f32 %v345, %v437
        %v492 = vrot.slane %v463, 7
        %v494 = vsub.f32 %v345, %v492
        %v496 = vrot.slane %v489, 6
        %v498 = vsub.f32 %v345, %v496
        %v499 = vsub.f32 0.0, %v489
        %v500 = vsub.f32 0.0, %v437
        %v501 = vsub.f32 0.0, %v463
        %v502 = vmul.f32 %v375, %v489
        %v503 = vmul.f32 %v378, %v463
        %v504 = vsub.f32 %v502, %v503
        %v505 = vmul.f32 %v378, %v437
        %v506 = vmul.f32 %v350, %v489
        %v507 = vsub.f32 %v505, %v506
        %v508 = vmul.f32 %v350, %v463
        %v509 = vmul.f32 %v375, %v437
        %v510 = vsub.f32 %v508, %v509
        %v511 = vmul.f32 %v395, %v489
        %v512 = vmul.f32 %v405, %v463
        %v513 = vsub.f32 %v511, %v512
        %v514 = vmul.f32 %v405, %v437
        %v515 = vsub.f32 %v514, %v502
        %v516 = vmul.f32 %v375, %v463
        %v517 = vmul.f32 %v395, %v437
        %v518 = vsub.f32 %v516, %v517
        %v519 = vmul.f32 %v405, %v489
        %v520 = vmul.f32 %v406, %v463
        %v521 = vsub.f32 %v519, %v520
        %v522 = vmul.f32 %v406, %v437
        %v523 = vmul.f32 %v378, %v489
        %v524 = vsub.f32 %v522, %v523
        %v525 = vsub.f32 %v503, %v514
        %v526 = vmul.f32 %v350, %v490
        %v529 = vunpack.c.l.s4 1966171168
        %v530 = vunpack.c.0.s8 %v529
        %v531 = vlaneseq
        %v532 = vshrl.u32 %v531, 7
        %v533 = vsub.s32 %v530, %v532
        %v534 = vrot.slane %v494, %v533
        %v535 = vcombine.high %v534, %v534
        %v537 = vunpack.c.l.s4 1966171168
        %v538 = vunpack.c.0.s8 %v537
        %v539 = vlaneseq
        %v540 = vshrl.u32 %v539, 7
        %v541 = vsub.s32 %v538, %v540
        %v542 = vrot.slane %v535, %v541
        %v544 = vmul.f32 %v375, %v542
        %v545 = vadd.f32 %v526, %v544
        %v548 = vunpack.c.l.s4 1966171168
        %v549 = vunpack.c.0.s8 %v548
        %v550 = vlaneseq
        %v551 = vshrl.u32 %v550, 7
        %v552 = vsub.s32 %v549, %v551
        %v553 = vrot.slane %v498, %v552
        %v555 = vunpack.c.l.s4 1966171168
        %v556 = vunpack.c.0.s8 %v555
        %v557 = vlaneseq
        %v558 = vshrl.u32 %v557, 7
        %v559 = vsub.s32 %v556, %v558
        %v560 = vrot.slane %v553, %v559
        %v561 = vcombine.high %v560, %v560
        %v563 = vmul.f32 %v378, %v561
        %v564 = vadd.f32 %v545, %v563
        %v565 = vmul.f32 %v375, %v490
        %v566 = vmul.f32 %v395, %v542
        %v567 = vadd.f32 %v565, %v566
        %v568 = vmul.f32 %v405, %v561
        %v569 = vadd.f32 %v567, %v568
        %v570 = vmul.f32 %v378, %v490
        %v571 = vmul.f32 %v405, %v542
        %v572 = vadd.f32 %v570, %v571
        %v573 = vmul.f32 %v406, %v561
        %v574 = vadd.f32 %v572, %v573
        %v575 = vsub.f32 0.0, %v350
        %v576 = vsub.f32 0.0, %v375
        %v577 = vsub.f32 0.0, %v378
        %v579 = vrot.slane %v499, 4
        %v581 = vrot.slane %v463, 3
        %vm583 = vcmask 1040384
        %v584 = vsel %vm583, -1.0, 0.0
        %vm585 = vcmask 1041408
        %v586 = vsel %vm585, %v584, 0.0
        %vm587 = vcmask 1042432
        %v588 = vsel %vm587, %v586, 0.0
        %vm589 = vcmask 1043456
        %v590 = vsel %vm589, %v588, %v579
        %vm591 = vcmask 1044480
        %v592 = vsel %vm591, %v590, %v581
        %vm593 = vcmask 1045504
        %v594 = vsel %vm593, %v592, 0.0
        %vm595 = vcmask 1046528
        %v596 = vsel %vm595, %v594, 0.0
        %v598 = vlaneseq
        %v599 = vshrl.u32 %v598, 7
        %v600 = vsub.s32 0, %v599
        %v601 = vrot.slane %v576, %v600
        %v604 = vlaneseq
        %v605 = vshrl.u32 %v604, 7
        %v606 = vsub.s32 0, %v605
        %v607 = vrot.slane %v577, %v606
        %v610 = vlaneseq
        %v611 = vshrl.u32 %v610, 7
        %v612 = vsub.s32 0, %v611
        %v613 = vrot.slane %v504, %v612
        %v616 = vlaneseq
        %v617 = vshrl.u32 %v616, 7
        %v618 = vsub.s32 0, %v617
        %v619 = vrot.slane %v507, %v618
        %v622 = vlaneseq
        %v623 = vshrl.u32 %v622, 7
        %v624 = vsub.s32 0, %v623
        %v625 = vrot.slane %v510, %v624
        %v628 = vlaneseq
        %v629 = vshrl.u32 %v628, 7
        %v630 = vsub.s32 0, %v629
        %v631 = vrot.slane %v564, %v630
        %v633 = vsel %vm583, %v575, %v601
        %v634 = vsel %vm585, %v633, %v607
        %v635 = vsel %vm587, %v634, %v613
        %v636 = vsel %vm589, %v635, %v619
        %v637 = vsel %vm591, %v636, %v625
        %v638 = vsel %vm593, %v637, %v631
        %v639 = vsel %vm595, %v638, 0.0
        %v640 = vsub.f32 0.0, %v395
        %v641 = vsub.f32 0.0, %v405
        %v642 = vrot.slane %v489, 5
        %v645 = vrot.slane %v500, 3
        %v647 = vsel %vm583, 0.0, -1.0
        %v648 = vsel %vm585, %v647, 0.0
        %v649 = vsel %vm587, %v648, %v642
        %v650 = vsel %vm589, %v649, 0.0
        %v651 = vsel %vm591, %v650, %v645
        %v652 = vsel %vm593, %v651, 0.0
        %v653 = vsel %vm595, %v652, 0.0
        %v655 = vlaneseq
        %v656 = vshrl.u32 %v655, 7
        %v657 = vsub.s32 0, %v656
        %v658 = vrot.slane %v640, %v657
        %v661 = vlaneseq
        %v662 = vshrl.u32 %v661, 7
        %v663 = vsub.s32 0, %v662
        %v664 = vrot.slane %v641, %v663
        %v667 = vlaneseq
        %v668 = vshrl.u32 %v667, 7
        %v669 = vsub.s32 0, %v668
        %v670 = vrot.slane %v513, %v669
        %v673 = vlaneseq
        %v674 = vshrl.u32 %v673, 7
        %v675 = vsub.s32 0, %v674
        %v676 = vrot.slane %v515, %v675
        %v679 = vlaneseq
        %v680 = vshrl.u32 %v679, 7
        %v681 = vsub.s32 0, %v680
        %v682 = vrot.slane %v518, %v681
        %v685 = vlaneseq
        %v686 = vshrl.u32 %v685, 7
        %v687 = vsub.s32 0, %v686
        %v688 = vrot.slane %v569, %v687
        %v690 = vsel %vm583, %v576, %v658
        %v691 = vsel %vm585, %v690, %v664
        %v692 = vsel %vm587, %v691, %v670
        %v693 = vsel %vm589, %v692, %v676
        %v694 = vsel %vm591, %v693, %v682
        %v695 = vsel %vm593, %v694, %v688
        %v696 = vsel %vm595, %v695, 0.0
        %697 = vmatprep.subr.mxu0 0.0
        %698 = vmatpush1.xpose.msra.mxu0 %v696
        %699 = vmatprep.subr.mxu0 0.0
        %700 = vmatpush1.xpose.msra.mxu0 0.0
        %701 = vmatprep.subr.mxu0 0.0
        %702 = vmatpush1.xpose.msra.mxu0 0.0
        %703 = vmatprep.subr.mxu0 0.0
        %704 = vmatpush1.xpose.msra.mxu0 0.0
        %705 = vmatprep.subr.mxu0 0.0
        %706 = vmatpush1.xpose.msra.mxu0 0.0
        %707 = vmatprep.subr.mxu0 0.0
        %708 = vmatpush1.xpose.msra.mxu0 0.0
        %709 = vmatprep.subr.mxu0 0.0
        %710 = vmatpush1.xpose.msra.mxu0 0.0
        %711 = vmatprep.subr.mxu0 0.0
        %712 = vmatpush1.xpose.msra.mxu0 0.0
        %713 = vmatprep.subr.mxu0 0.0
        %714 = vmatpush1.xpose.msra.mxu0 0.0
        %715 = vmatprep.subr.mxu0 0.0
        %716 = vmatpush1.xpose.msra.mxu0 0.0
        %717 = vmatprep.subr.mxu0 0.0
        %718 = vmatpush1.xpose.msra.mxu0 0.0
        %719 = vmatprep.subr.mxu0 0.0
        %720 = vmatpush1.xpose.msra.mxu0 0.0
        %721 = vmatprep.subr.mxu0 0.0
        %722 = vmatpush1.xpose.msra.mxu0 0.0
        %723 = vmatprep.subr.mxu0 0.0
        %724 = vmatpush1.xpose.msra.mxu0 0.0
        %725 = vmatprep.subr.mxu0 0.0
        %726 = vmatpush1.xpose.msra.mxu0 0.0
        %727 = vmatprep.subr.mxu0 0.0
        %728 = vmatpush1.xpose.msra.mxu0 0.0
        %729 = vmatprep.subr.mxu0 0.0
        %730 = vmatpush1.xpose.msra.mxu0 0.0
        %731 = vmatprep.subr.mxu0 0.0
        %732 = vmatpush1.xpose.msra.mxu0 0.0
        %733 = vmatprep.subr.mxu0 0.0
        %734 = vmatpush1.xpose.msra.mxu0 0.0
        %735 = vmatprep.subr.mxu0 0.0
        %736 = vmatpush1.xpose.msra.mxu0 0.0
        %737 = vmatprep.subr.mxu0 0.0
        %738 = vmatpush1.xpose.msra.mxu0 0.0
        %739 = vmatprep.subr.mxu0 0.0
        %740 = vmatpush1.xpose.msra.mxu0 0.0
        %741 = vmatprep.subr.mxu0 0.0
        %742 = vmatpush1.xpose.msra.mxu0 0.0
        %743 = vmatprep.subr.mxu0 0.0
        %744 = vmatpush1.xpose.msra.mxu0 0.0
        %745 = vmatprep.subr.mxu0 0.0
        %746 = vmatpush1.xpose.msra.mxu0 0.0
        %747 = vmatprep.subr.mxu0 0.0
        %748 = vmatpush1.xpose.msra.mxu0 0.0
        %749 = vmatprep.subr.mxu0 0.0
        %750 = vmatpush1.xpose.msra.mxu0 0.0
        %751 = vmatprep.subr.mxu0 0.0
        %752 = vmatpush1.xpose.msra.mxu0 0.0
        %753 = vmatprep.subr.mxu0 0.0
        %754 = vmatpush1.xpose.msra.mxu0 0.0
        %755 = vmatprep.subr.mxu0 0.0
        %756 = vmatpush1.xpose.msra.mxu0 0.0
        %757 = vmatprep.subr.mxu0 0.0
        %758 = vmatpush1.xpose.msra.mxu0 0.0
        %759 = vmatprep.subr.mxu0 0.0
        %760 = vmatpush1.xpose.msra.mxu0 0.0
        %761 = vmatprep.mubr.f32.mxu0 0.0
        %762 = vmatmul.mubr.f32.gmra.mrb[0].mxu0 %v653
        %v763 = vpop.f32.mrb[0].mxu0
        %v764 = vadd.f32 0.0, %v763
        %v765 = vpop.f32.mrb[0].mxu0
        %766 = vdwg.mxu0
        %767 = vmatprep.subr.mxu0 0.0
        %768 = vmatpush1.xpose.msra.mxu0 %v639
        %769 = vmatprep.subr.mxu0 0.0
        %770 = vmatpush1.xpose.msra.mxu0 0.0
        %771 = vmatprep.subr.mxu0 0.0
        %772 = vmatpush1.xpose.msra.mxu0 0.0
        %773 = vmatprep.subr.mxu0 0.0
        %774 = vmatpush1.xpose.msra.mxu0 0.0
        %775 = vmatprep.subr.mxu0 0.0
        %776 = vmatpush1.xpose.msra.mxu0 0.0
        %777 = vmatprep.subr.mxu0 0.0
        %778 = vmatpush1.xpose.msra.mxu0 0.0
        %779 = vmatprep.subr.mxu0 0.0
        %780 = vmatpush1.xpose.msra.mxu0 0.0
        %781 = vmatprep.subr.mxu0 0.0
        %782 = vmatpush1.xpose.msra.mxu0 0.0
        %783 = vmatprep.subr.mxu0 0.0
        %784 = vmatpush1.xpose.msra.mxu0 0.0
        %785 = vmatprep.subr.mxu0 0.0
        %786 = vmatpush1.xpose.msra.mxu0 0.0
        %787 = vmatprep.subr.mxu0 0.0
        %788 = vmatpush1.xpose.msra.mxu0 0.0
        %789 = vmatprep.subr.mxu0 0.0
        %790 = vmatpush1.xpose.msra.mxu0 0.0
        %791 = vmatprep.subr.mxu0 0.0
        %792 = vmatpush1.xpose.msra.mxu0 0.0
        %793 = vmatprep.subr.mxu0 0.0
        %794 = vmatpush1.xpose.msra.mxu0 0.0
        %795 = vmatprep.subr.mxu0 0.0
        %796 = vmatpush1.xpose.msra.mxu0 0.0
        %797 = vmatprep.subr.mxu0 0.0
        %798 = vmatpush1.xpose.msra.mxu0 0.0
        %799 = vmatprep.subr.mxu0 0.0
        %800 = vmatpush1.xpose.msra.mxu0 0.0
        %801 = vmatprep.subr.mxu0 0.0
        %802 = vmatpush1.xpose.msra.mxu0 0.0
        %803 = vmatprep.subr.mxu0 0.0
        %804 = vmatpush1.xpose.msra.mxu0 0.0
        %805 = vmatprep.subr.mxu0 0.0
        %806 = vmatpush1.xpose.msra.mxu0 0.0
        %807 = vmatprep.subr.mxu0 0.0
        %808 = vmatpush1.xpose.msra.mxu0 0.0
        %809 = vmatprep.subr.mxu0 0.0
        %810 = vmatpush1.xpose.msra.mxu0 0.0
        %811 = vmatprep.subr.mxu0 0.0
        %812 = vmatpush1.xpose.msra.mxu0 0.0
        %813 = vmatprep.subr.mxu0 0.0
        %814 = vmatpush1.xpose.msra.mxu0 0.0
        %815 = vmatprep.subr.mxu0 0.0
        %816 = vmatpush1.xpose.msra.mxu0 0.0
        %817 = vmatprep.subr.mxu0 0.0
        %818 = vmatpush1.xpose.msra.mxu0 0.0
        %819 = vmatprep.subr.mxu0 0.0
        %820 = vmatpush1.xpose.msra.mxu0 0.0
        %821 = vmatprep.subr.mxu0 0.0
        %822 = vmatpush1.xpose.msra.mxu0 0.0
        %823 = vmatprep.subr.mxu0 0.0
        %824 = vmatpush1.xpose.msra.mxu0 0.0
        %825 = vmatprep.subr.mxu0 0.0
        %826 = vmatpush1.xpose.msra.mxu0 0.0
        %827 = vmatprep.subr.mxu0 0.0
        %828 = vmatpush1.xpose.msra.mxu0 0.0
        %829 = vmatprep.subr.mxu0 0.0
        %830 = vmatpush1.xpose.msra.mxu0 0.0
        %831 = vmatprep.mubr.f32.mxu0 0.0
        %832 = vmatmul.mubr.f32.gmra.mrb[0].mxu0 %v596
        %v833 = vpop.f32.mrb[0].mxu0
        %v834 = vadd.f32 %v764, %v833
        %v835 = vpop.f32.mrb[0].mxu0
        %836 = vdwg.mxu0
        %v837 = vsub.f32 0.0, %v406
        %v839 = vrot.slane %v501, 5
        %v842 = vrot.slane %v437, 4
        %v844 = vsel %vm585, 0.0, -1.0
        %v845 = vsel %vm587, %v844, %v839
        %v846 = vsel %vm589, %v845, %v842
        %v847 = vsel %vm591, %v846, 0.0
        %v848 = vsel %vm593, %v847, 0.0
        %v849 = vsel %vm595, %v848, 0.0
        %v851 = vlaneseq
        %v852 = vshrl.u32 %v851, 7
        %v853 = vsub.s32 0, %v852
        %v854 = vrot.slane %v837, %v853
        %v857 = vlaneseq
        %v858 = vshrl.u32 %v857, 7
        %v859 = vsub.s32 0, %v858
        %v860 = vrot.slane %v521, %v859
        %v863 = vlaneseq
        %v864 = vshrl.u32 %v863, 7
        %v865 = vsub.s32 0, %v864
        %v866 = vrot.slane %v524, %v865
        %v869 = vlaneseq
        %v870 = vshrl.u32 %v869, 7
        %v871 = vsub.s32 0, %v870
        %v872 = vrot.slane %v525, %v871
        %v875 = vlaneseq
        %v876 = vshrl.u32 %v875, 7
        %v877 = vsub.s32 0, %v876
        %v878 = vrot.slane %v574, %v877
        %v880 = vsel %vm583, %v577, %v664
        %v881 = vsel %vm585, %v880, %v854
        %v882 = vsel %vm587, %v881, %v860
        %v883 = vsel %vm589, %v882, %v866
        %v884 = vsel %vm591, %v883, %v872
        %v885 = vsel %vm593, %v884, %v878
        %v886 = vsel %vm595, %v885, 0.0
        %887 = vmatprep.subr.mxu0 0.0
        %888 = vmatpush1.xpose.msra.mxu0 %v886
        %889 = vmatprep.subr.mxu0 0.0
        %890 = vmatpush1.xpose.msra.mxu0 0.0
        %891 = vmatprep.subr.mxu0 0.0
        %892 = vmatpush1.xpose.msra.mxu0 0.0
        %893 = vmatprep.subr.mxu0 0.0
        %894 = vmatpush1.xpose.msra.mxu0 0.0
        %895 = vmatprep.subr.mxu0 0.0
        %896 = vmatpush1.xpose.msra.mxu0 0.0
        %897 = vmatprep.subr.mxu0 0.0
        %898 = vmatpush1.xpose.msra.mxu0 0.0
        %899 = vmatprep.subr.mxu0 0.0
        %900 = vmatpush1.xpose.msra.mxu0 0.0
        %901 = vmatprep.subr.mxu0 0.0
        %902 = vmatpush1.xpose.msra.mxu0 0.0
        %903 = vmatprep.subr.mxu0 0.0
        %904 = vmatpush1.xpose.msra.mxu0 0.0
        %905 = vmatprep.subr.mxu0 0.0
        %906 = vmatpush1.xpose.msra.mxu0 0.0
        %907 = vmatprep.subr.mxu0 0.0
        %908 = vmatpush1.xpose.msra.mxu0 0.0
        %909 = vmatprep.subr.mxu0 0.0
        %910 = vmatpush1.xpose.msra.mxu0 0.0
        %911 = vmatprep.subr.mxu0 0.0
        %912 = vmatpush1.xpose.msra.mxu0 0.0
        %913 = vmatprep.subr.mxu0 0.0
        %914 = vmatpush1.xpose.msra.mxu0 0.0
        %915 = vmatprep.subr.mxu0 0.0
        %916 = vmatpush1.xpose.msra.mxu0 0.0
        %917 = vmatprep.subr.mxu0 0.0
        %918 = vmatpush1.xpose.msra.mxu0 0.0
        %919 = vmatprep.subr.mxu0 0.0
        %920 = vmatpush1.xpose.msra.mxu0 0.0
        %921 = vmatprep.subr.mxu0 0.0
        %922 = vmatpush1.xpose.msra.mxu0 0.0
        %923 = vmatprep.subr.mxu0 0.0
        %924 = vmatpush1.xpose.msra.mxu0 0.0
        %925 = vmatprep.subr.mxu0 0.0
        %926 = vmatpush1.xpose.msra.mxu0 0.0
        %927 = vmatprep.subr.mxu0 0.0
        %928 = vmatpush1.xpose.msra.mxu0 0.0
        %929 = vmatprep.subr.mxu0 0.0
        %930 = vmatpush1.xpose.msra.mxu0 0.0
        %931 = vmatprep.subr.mxu0 0.0
        %932 = vmatpush1.xpose.msra.mxu0 0.0
        %933 = vmatprep.subr.mxu0 0.0
        %934 = vmatpush1.xpose.msra.mxu0 0.0
        %935 = vmatprep.subr.mxu0 0.0
        %936 = vmatpush1.xpose.msra.mxu0 0.0
        %937 = vmatprep.subr.mxu0 0.0
        %938 = vmatpush1.xpose.msra.mxu0 0.0
        %939 = vmatprep.subr.mxu0 0.0
        %940 = vmatpush1.xpose.msra.mxu0 0.0
        %941 = vmatprep.subr.mxu0 0.0
        %942 = vmatpush1.xpose.msra.mxu0 0.0
        %943 = vmatprep.subr.mxu0 0.0
        %944 = vmatpush1.xpose.msra.mxu0 0.0
        %945 = vmatprep.subr.mxu0 0.0
        %946 = vmatpush1.xpose.msra.mxu0 0.0
        %947 = vmatprep.subr.mxu0 0.0
        %948 = vmatpush1.xpose.msra.mxu0 0.0
        %949 = vmatprep.subr.mxu0 0.0
        %950 = vmatpush1.xpose.msra.mxu0 0.0
        %951 = vmatprep.mubr.f32.mxu0 0.0
        %952 = vmatmul.mubr.f32.gmra.mrb[0].mxu0 %v849
        %v953 = vpop.f32.mrb[0].mxu0
        %v954 = vadd.f32 0.0, %v953
        %v955 = vpop.f32.mrb[0].mxu0
        %956 = vdwg.mxu0
        %v957 = vadd.f32 %v834, %v954
        %v958 = vmul.f32 %v957, 1.0000001
        %v959 = vadd.f32 %v958, 1e-08
        %v960 = vrsqrt.pop %v959
        %v961 = vmul.f32 %v959, %v960
        %vm962 = vcmp.eq.f32.partialorder %v959, inf
        %v963 = vsel %vm962, %v959, %v961
        %vm964 = vcmp.eq.f32.partialorder %v959, 0.0
        %v965 = vand.u32 %v959, 2147483648
        %v966 = vsel %vm964, %v965, %v963
        %v968 = vrot.slane %v966, 7
        %v970 = vrcp.pop %v968
        %v971 = vmul.f32 %v957, %v970
        %v972 = vmul.f32 %v971, %v971
        %974 = vrot.lane.b32.xlu0 %v972, 1
        %v975 = vpop.permute.xlu0 %974
        %v977 = vsub.f32 %v959, %v975
        %v978 = vrsqrt.pop %v977
        %v979 = vmul.f32 %v977, %v978
        %vm980 = vcmp.eq.f32.partialorder %v977, inf
        %v981 = vsel %vm980, %v977, %v979
        %vm982 = vcmp.eq.f32.partialorder %v977, 0.0
        %v983 = vand.u32 %v977, 2147483648
        %v984 = vsel %vm982, %v983, %v981
        %v985 = vrot.slane %v966, 6
        %v987 = vrcp.pop %v985
        %v988 = vmul.f32 %v957, %v987
        %v990 = vrot.slane %v971, 7
        %v992 = vmul.f32 %v988, %v990
        %994 = vrot.lane.b32.xlu0 %v992, 1
        %v995 = vpop.permute.xlu0 %994
        %v997 = vsub.f32 %v957, %v995
        %v999 = vrot.slane %v984, 7
        %v1001 = vrcp.pop %v999
        %v1002 = vmul.f32 %v997, %v1001
        %v1003 = vmul.f32 %v988, %v988
        %1005 = vrot.lane.b32.xlu0 %v1003, 2
        %v1006 = vpop.permute.xlu0 %1005
        %v1008 = vsub.f32 %v959, %v1006
        %v1009 = vmul.f32 %v1002, %v1002
        %1011 = vrot.lane.b32.xlu0 %v1009, 1
        %v1012 = vpop.permute.xlu0 %1011
        %v1014 = vsub.f32 %v1008, %v1012
        %v1015 = vrsqrt.pop %v1014
        %v1016 = vmul.f32 %v1014, %v1015
        %vm1017 = vcmp.eq.f32.partialorder %v1014, inf
        %v1018 = vsel %vm1017, %v1014, %v1016
        %vm1019 = vcmp.eq.f32.partialorder %v1014, 0.0
        %v1020 = vand.u32 %v1014, 2147483648
        %v1021 = vsel %vm1019, %v1020, %v1018
        %v1022 = vrot.slane %v966, 5
        %v1024 = vrcp.pop %v1022
        %v1025 = vmul.f32 %v957, %v1024
        %v1026 = vrot.slane %v971, 6
        %v1028 = vmul.f32 %v1025, %v1026
        %1030 = vrot.lane.b32.xlu0 %v1028, 1
        %v1031 = vpop.permute.xlu0 %1030
        %v1033 = vsub.f32 %v957, %v1031
        %v1034 = vrot.slane %v984, 6
        %v1036 = vrcp.pop %v1034
        %v1037 = vmul.f32 %v1033, %v1036
        %v1039 = vrot.slane %v988, 7
        %v1041 = vmul.f32 %v1025, %v1039
        %1043 = vrot.lane.b32.xlu0 %v1041, 2
        %v1044 = vpop.permute.xlu0 %1043
        %v1046 = vsub.f32 %v957, %v1044
        %v1048 = vrot.slane %v1002, 7
        %v1050 = vmul.f32 %v1037, %v1048
        %1052 = vrot.lane.b32.xlu0 %v1050, 1
        %v1053 = vpop.permute.xlu0 %1052
        %v1055 = vsub.f32 %v1046, %v1053
        %v1057 = vrot.slane %v1021, 7
        %v1059 = vrcp.pop %v1057
        %v1060 = vmul.f32 %v1055, %v1059
        %v1061 = vmul.f32 %v1025, %v1025
        %1063 = vrot.lane.b32.xlu0 %v1061, 3
        %v1064 = vpop.permute.xlu0 %1063
        %v1066 = vsub.f32 %v959, %v1064
        %v1067 = vmul.f32 %v1037, %v1037
        %1069 = vrot.lane.b32.xlu0 %v1067, 2
        %v1070 = vpop.permute.xlu0 %1069
        %v1072 = vsub.f32 %v1066, %v1070
        %v1073 = vmul.f32 %v1060, %v1060
        %1075 = vrot.lane.b32.xlu0 %v1073, 1
        %v1076 = vpop.permute.xlu0 %1075
        %v1078 = vsub.f32 %v1072, %v1076
        %v1079 = vrsqrt.pop %v1078
        %v1080 = vmul.f32 %v1078, %v1079
        %vm1081 = vcmp.eq.f32.partialorder %v1078, inf
        %v1082 = vsel %vm1081, %v1078, %v1080
        %vm1083 = vcmp.eq.f32.partialorder %v1078, 0.0
        %v1084 = vand.u32 %v1078, 2147483648
        %v1085 = vsel %vm1083, %v1084, %v1082
        %v1086 = vrot.slane %v966, 4
        %v1088 = vrcp.pop %v1086
        %v1089 = vmul.f32 %v957, %v1088
        %v1090 = vrot.slane %v971, 5
        %v1092 = vmul.f32 %v1089, %v1090
        %1094 = vrot.lane.b32.xlu0 %v1092, 1
        %v1095 = vpop.permute.xlu0 %1094
        %v1097 = vsub.f32 %v957, %v1095
        %v1098 = vrot.slane %v984, 5
        %v1100 = vrcp.pop %v1098
        %v1101 = vmul.f32 %v1097, %v1100
        %v1102 = vrot.slane %v988, 6
        %v1104 = vmul.f32 %v1089, %v1102
        %1106 = vrot.lane.b32.xlu0 %v1104, 2
        %v1107 = vpop.permute.xlu0 %1106
        %v1109 = vsub.f32 %v957, %v1107
        %v1110 = vrot.slane %v1002, 6
        %v1112 = vmul.f32 %v1101, %v1110
        %1114 = vrot.lane.b32.xlu0 %v1112, 1
        %v1115 = vpop.permute.xlu0 %1114
        %v1117 = vsub.f32 %v1109, %v1115
        %v1118 = vrot.slane %v1021, 6
        %v1120 = vrcp.pop %v1118
        %v1121 = vmul.f32 %v1117, %v1120
        %v1123 = vrot.slane %v1025, 7
        %v1125 = vmul.f32 %v1089, %v1123
        %1127 = vrot.lane.b32.xlu0 %v1125, 3
        %v1128 = vpop.permute.xlu0 %1127
        %v1130 = vsub.f32 %v957, %v1128
        %v1132 = vrot.slane %v1037, 7
        %v1134 = vmul.f32 %v1101, %v1132
        %1136 = vrot.lane.b32.xlu0 %v1134, 2
        %v1137 = vpop.permute.xlu0 %1136
        %v1139 = vsub.f32 %v1130, %v1137
        %v1141 = vrot.slane %v1060, 7
        %v1143 = vmul.f32 %v1121, %v1141
        %1145 = vrot.lane.b32.xlu0 %v1143, 1
        %v1146 = vpop.permute.xlu0 %1145
        %v1148 = vsub.f32 %v1139, %v1146
        %v1150 = vrot.slane %v1085, 7
        %v1152 = vrcp.pop %v1150
        %v1153 = vmul.f32 %v1148, %v1152
        %v1154 = vmul.f32 %v1089, %v1089
        %1156 = vrot.lane.b32.xlu0 %v1154, 4
        %v1157 = vpop.permute.xlu0 %1156
        %v1159 = vsub.f32 %v959, %v1157
        %v1160 = vmul.f32 %v1101, %v1101
        %1162 = vrot.lane.b32.xlu0 %v1160, 3
        %v1163 = vpop.permute.xlu0 %1162
        %v1165 = vsub.f32 %v1159, %v1163
        %v1166 = vmul.f32 %v1121, %v1121
        %1168 = vrot.lane.b32.xlu0 %v1166, 2
        %v1169 = vpop.permute.xlu0 %1168
        %v1171 = vsub.f32 %v1165, %v1169
        %v1172 = vmul.f32 %v1153, %v1153
        %1174 = vrot.lane.b32.xlu0 %v1172, 1
        %v1175 = vpop.permute.xlu0 %1174
        %v1177 = vsub.f32 %v1171, %v1175
        %v1178 = vrsqrt.pop %v1177
        %v1179 = vmul.f32 %v1177, %v1178
        %vm1180 = vcmp.eq.f32.partialorder %v1177, inf
        %v1181 = vsel %vm1180, %v1177, %v1179
        %vm1182 = vcmp.eq.f32.partialorder %v1177, 0.0
        %v1183 = vand.u32 %v1177, 2147483648
        %v1184 = vsel %vm1182, %v1183, %v1181
        %v1185 = vrot.slane %v966, 3
        %v1187 = vrcp.pop %v1185
        %v1188 = vmul.f32 %v957, %v1187
        %v1189 = vrot.slane %v971, 4
        %v1191 = vmul.f32 %v1188, %v1189
        %1193 = vrot.lane.b32.xlu0 %v1191, 1
        %v1194 = vpop.permute.xlu0 %1193
        %v1196 = vsub.f32 %v957, %v1194
        %v1197 = vrot.slane %v984, 4
        %v1199 = vrcp.pop %v1197
        %v1200 = vmul.f32 %v1196, %v1199
        %v1201 = vrot.slane %v988, 5
        %v1203 = vmul.f32 %v1188, %v1201
        %1205 = vrot.lane.b32.xlu0 %v1203, 2
        %v1206 = vpop.permute.xlu0 %1205
        %v1208 = vsub.f32 %v957, %v1206
        %v1209 = vrot.slane %v1002, 5
        %v1211 = vmul.f32 %v1200, %v1209
        %1213 = vrot.lane.b32.xlu0 %v1211, 1
        %v1214 = vpop.permute.xlu0 %1213
        %v1216 = vsub.f32 %v1208, %v1214
        %v1217 = vrot.slane %v1021, 5
        %v1219 = vrcp.pop %v1217
        %v1220 = vmul.f32 %v1216, %v1219
        %v1221 = vrot.slane %v1025, 6
        %v1223 = vmul.f32 %v1188, %v1221
        %1225 = vrot.lane.b32.xlu0 %v1223, 3
        %v1226 = vpop.permute.xlu0 %1225
        %v1228 = vsub.f32 %v957, %v1226
        %v1229 = vrot.slane %v1037, 6
        %v1231 = vmul.f32 %v1200, %v1229
        %1233 = vrot.lane.b32.xlu0 %v1231, 2
        %v1234 = vpop.permute.xlu0 %1233
        %v1236 = vsub.f32 %v1228, %v1234
        %v1237 = vrot.slane %v1060, 6
        %v1239 = vmul.f32 %v1220, %v1237
        %1241 = vrot.lane.b32.xlu0 %v1239, 1
        %v1242 = vpop.permute.xlu0 %1241
        %v1244 = vsub.f32 %v1236, %v1242
        %v1245 = vrot.slane %v1085, 6
        %v1247 = vrcp.pop %v1245
        %v1248 = vmul.f32 %v1244, %v1247
        %v1250 = vrot.slane %v1089, 7
        %v1252 = vmul.f32 %v1188, %v1250
        %1254 = vrot.lane.b32.xlu0 %v1252, 4
        %v1255 = vpop.permute.xlu0 %1254
        %v1257 = vsub.f32 %v957, %v1255
        %v1259 = vrot.slane %v1101, 7
        %v1261 = vmul.f32 %v1200, %v1259
        %1263 = vrot.lane.b32.xlu0 %v1261, 3
        %v1264 = vpop.permute.xlu0 %1263
        %v1266 = vsub.f32 %v1257, %v1264
        %v1268 = vrot.slane %v1121, 7
        %v1270 = vmul.f32 %v1220, %v1268
        %1272 = vrot.lane.b32.xlu0 %v1270, 2
        %v1273 = vpop.permute.xlu0 %1272
        %v1275 = vsub.f32 %v1266, %v1273
        %v1277 = vrot.slane %v1153, 7
        %v1279 = vmul.f32 %v1248, %v1277
        %1281 = vrot.lane.b32.xlu0 %v1279, 1
        %v1282 = vpop.permute.xlu0 %1281
        %v1284 = vsub.f32 %v1275, %v1282
        %v1286 = vrot.slane %v1184, 7
        %v1288 = vrcp.pop %v1286
        %v1289 = vmul.f32 %v1284, %v1288
        %v1290 = vmul.f32 %v1188, %v1188
        %1292 = vrot.lane.b32.xlu0 %v1290, 5
        %v1293 = vpop.permute.xlu0 %1292
        %v1295 = vsub.f32 %v959, %v1293
        %v1296 = vmul.f32 %v1200, %v1200
        %1298 = vrot.lane.b32.xlu0 %v1296, 4
        %v1299 = vpop.permute.xlu0 %1298
        %v1301 = vsub.f32 %v1295, %v1299
        %v1302 = vmul.f32 %v1220, %v1220
        %1304 = vrot.lane.b32.xlu0 %v1302, 3
        %v1305 = vpop.permute.xlu0 %1304
        %v1307 = vsub.f32 %v1301, %v1305
        %v1308 = vmul.f32 %v1248, %v1248
        %1310 = vrot.lane.b32.xlu0 %v1308, 2
        %v1311 = vpop.permute.xlu0 %1310
        %v1313 = vsub.f32 %v1307, %v1311
        %v1314 = vmul.f32 %v1289, %v1289
        %1316 = vrot.lane.b32.xlu0 %v1314, 1
        %v1317 = vpop.permute.xlu0 %1316
        %v1319 = vsub.f32 %v1313, %v1317
        %v1320 = vrsqrt.pop %v1319
        %v1321 = vmul.f32 %v1319, %v1320
        %vm1322 = vcmp.eq.f32.partialorder %v1319, inf
        %v1323 = vsel %vm1322, %v1319, %v1321
        %vm1324 = vcmp.eq.f32.partialorder %v1319, 0.0
        %v1325 = vand.u32 %v1319, 2147483648
        %v1326 = vsel %vm1324, %v1325, %v1323
        %v1327 = vsub.f32 0.0, %v957
        %1328 = vrot.lane.b32.xlu0 %v966, 6
        %v1329 = vpop.permute.xlu0 %1328
        %v1331 = vrcp.pop %v1329
        %v1332 = vmul.f32 %v1327, %v1331
        %v1334 = vrot.slane %v1332, 7
        %1335 = vrot.lane.b32.xlu0 %v1334, 122
        %v1336 = vpop.permute.xlu0 %1335
        %v1338 = vmul.f32 %v971, %v1336
        %1340 = vrot.lane.b32.xlu0 %v1338, 6
        %v1341 = vpop.permute.xlu0 %1340
        %v1343 = vsub.f32 %v1327, %v1341
        %1344 = vrot.lane.b32.xlu0 %v984, 5
        %v1345 = vpop.permute.xlu0 %1344
        %v1347 = vrcp.pop %v1345
        %v1348 = vmul.f32 %v1343, %v1347
        %v1349 = vrot.slane %v1332, 6
        %1350 = vrot.lane.b32.xlu0 %v1349, 122
        %v1351 = vpop.permute.xlu0 %1350
        %v1353 = vmul.f32 %v988, %v1351
        %1355 = vrot.lane.b32.xlu0 %v1353, 6
        %v1356 = vpop.permute.xlu0 %1355
        %v1358 = vsub.f32 %v1327, %v1356
        %v1360 = vrot.slane %v1348, 7
        %1361 = vrot.lane.b32.xlu0 %v1360, 123
        %v1362 = vpop.permute.xlu0 %1361
        %v1364 = vmul.f32 %v1002, %v1362
        %1366 = vrot.lane.b32.xlu0 %v1364, 5
        %v1367 = vpop.permute.xlu0 %1366
        %v1369 = vsub.f32 %v1358, %v1367
        %1370 = vrot.lane.b32.xlu0 %v1021, 4
        %v1371 = vpop.permute.xlu0 %1370
        %v1373 = vrcp.pop %v1371
        %v1374 = vmul.f32 %v1369, %v1373
        %v1375 = vrot.slane %v1332, 5
        %1376 = vrot.lane.b32.xlu0 %v1375, 122
        %v1377 = vpop.permute.xlu0 %1376
        %v1379 = vmul.f32 %v1025, %v1377
        %1381 = vrot.lane.b32.xlu0 %v1379, 6
        %v1382 = vpop.permute.xlu0 %1381
        %v1384 = vsub.f32 %v1327, %v1382
        %v1385 = vrot.slane %v1348, 6
        %1386 = vrot.lane.b32.xlu0 %v1385, 123
        %v1387 = vpop.permute.xlu0 %1386
        %v1389 = vmul.f32 %v1037, %v1387
        %1391 = vrot.lane.b32.xlu0 %v1389, 5
        %v1392 = vpop.permute.xlu0 %1391
        %v1394 = vsub.f32 %v1384, %v1392
        %v1396 = vrot.slane %v1374, 7
        %1397 = vrot.lane.b32.xlu0 %v1396, 124
        %v1398 = vpop.permute.xlu0 %1397
        %v1400 = vmul.f32 %v1060, %v1398
        %1402 = vrot.lane.b32.xlu0 %v1400, 4
        %v1403 = vpop.permute.xlu0 %1402
        %v1405 = vsub.f32 %v1394, %v1403
        %1406 = vrot.lane.b32.xlu0 %v1085, 3
        %v1407 = vpop.permute.xlu0 %1406
        %v1409 = vrcp.pop %v1407
        %v1410 = vmul.f32 %v1405, %v1409
        %v1411 = vrot.slane %v1332, 4
        %1412 = vrot.lane.b32.xlu0 %v1411, 122
        %v1413 = vpop.permute.xlu0 %1412
        %v1415 = vmul.f32 %v1089, %v1413
        %1417 = vrot.lane.b32.xlu0 %v1415, 6
        %v1418 = vpop.permute.xlu0 %1417
        %v1420 = vsub.f32 %v1327, %v1418
        %v1421 = vrot.slane %v1348, 5
        %1422 = vrot.lane.b32.xlu0 %v1421, 123
        %v1423 = vpop.permute.xlu0 %1422
        %v1425 = vmul.f32 %v1101, %v1423
        %1427 = vrot.lane.b32.xlu0 %v1425, 5
        %v1428 = vpop.permute.xlu0 %1427
        %v1430 = vsub.f32 %v1420, %v1428
        %v1431 = vrot.slane %v1374, 6
        %1432 = vrot.lane.b32.xlu0 %v1431, 124
        %v1433 = vpop.permute.xlu0 %1432
        %v1435 = vmul.f32 %v1121, %v1433
        %1437 = vrot.lane.b32.xlu0 %v1435, 4
        %v1438 = vpop.permute.xlu0 %1437
        %v1440 = vsub.f32 %v1430, %v1438
        %v1442 = vrot.slane %v1410, 7
        %1443 = vrot.lane.b32.xlu0 %v1442, 125
        %v1444 = vpop.permute.xlu0 %1443
        %v1446 = vmul.f32 %v1153, %v1444
        %1448 = vrot.lane.b32.xlu0 %v1446, 3
        %v1449 = vpop.permute.xlu0 %1448
        %v1451 = vsub.f32 %v1440, %v1449
        %1452 = vrot.lane.b32.xlu0 %v1184, 2
        %v1453 = vpop.permute.xlu0 %1452
        %v1455 = vrcp.pop %v1453
        %v1456 = vmul.f32 %v1451, %v1455
        %v1457 = vrot.slane %v1332, 3
        %1458 = vrot.lane.b32.xlu0 %v1457, 122
        %v1459 = vpop.permute.xlu0 %1458
        %v1461 = vmul.f32 %v1188, %v1459
        %1463 = vrot.lane.b32.xlu0 %v1461, 6
        %v1464 = vpop.permute.xlu0 %1463
        %v1466 = vsub.f32 %v1327, %v1464
        %v1467 = vrot.slane %v1348, 4
        %1468 = vrot.lane.b32.xlu0 %v1467, 123
        %v1469 = vpop.permute.xlu0 %1468
        %v1471 = vmul.f32 %v1200, %v1469
        %1473 = vrot.lane.b32.xlu0 %v1471, 5
        %v1474 = vpop.permute.xlu0 %1473
        %v1476 = vsub.f32 %v1466, %v1474
        %v1477 = vrot.slane %v1374, 5
        %1478 = vrot.lane.b32.xlu0 %v1477, 124
        %v1479 = vpop.permute.xlu0 %1478
        %v1481 = vmul.f32 %v1220, %v1479
        %1483 = vrot.lane.b32.xlu0 %v1481, 4
        %v1484 = vpop.permute.xlu0 %1483
        %v1486 = vsub.f32 %v1476, %v1484
        %v1487 = vrot.slane %v1410, 6
        %1488 = vrot.lane.b32.xlu0 %v1487, 125
        %v1489 = vpop.permute.xlu0 %1488
        %v1491 = vmul.f32 %v1248, %v1489
        %1493 = vrot.lane.b32.xlu0 %v1491, 3
        %v1494 = vpop.permute.xlu0 %1493
        %v1496 = vsub.f32 %v1486, %v1494
        %v1498 = vrot.slane %v1456, 7
        %1499 = vrot.lane.b32.xlu0 %v1498, 126
        %v1500 = vpop.permute.xlu0 %1499
        %v1502 = vmul.f32 %v1289, %v1500
        %1504 = vrot.lane.b32.xlu0 %v1502, 2
        %v1505 = vpop.permute.xlu0 %1504
        %v1507 = vsub.f32 %v1496, %v1505
        %1509 = vrot.lane.b32.xlu0 %v1326, 1
        %v1510 = vpop.permute.xlu0 %1509
        %v1512 = vrcp.pop %v1510
        %v1513 = vmul.f32 %v1507, %v1512
        %v1514 = vmul.f32 %v1513, %v1512
        %1516 = vrot.lane.b32.xlu0 %v1514, 126
        %v1517 = vpop.permute.xlu0 %1516
        %v1519 = vmul.f32 %v1289, %v1517
        %v1521 = vrot.slane %v1519, 1
        %1522 = vrot.lane.b32.xlu0 %v1521, 2
        %v1523 = vpop.permute.xlu0 %1522
        %v1525 = vsub.f32 %v1456, %v1523
        %v1526 = vmul.f32 %v1525, %v1455
        %1528 = vrot.lane.b32.xlu0 %v1526, 125
        %v1529 = vpop.permute.xlu0 %1528
        %v1531 = vmul.f32 %v1153, %v1529
        %v1533 = vrot.slane %v1531, 1
        %1534 = vrot.lane.b32.xlu0 %v1533, 3
        %v1535 = vpop.permute.xlu0 %1534
        %v1537 = vsub.f32 %v1410, %v1535
        %1538 = vrot.lane.b32.xlu0 %v1514, 125
        %v1539 = vpop.permute.xlu0 %1538
        %v1541 = vmul.f32 %v1248, %v1539
        %v1543 = vrot.slane %v1541, 2
        %1544 = vrot.lane.b32.xlu0 %v1543, 3
        %v1545 = vpop.permute.xlu0 %1544
        %v1547 = vsub.f32 %v1537, %v1545
        %v1548 = vmul.f32 %v1547, %v1409
        %1550 = vrot.lane.b32.xlu0 %v1548, 124
        %v1551 = vpop.permute.xlu0 %1550
        %v1553 = vmul.f32 %v1060, %v1551
        %v1555 = vrot.slane %v1553, 1
        %1556 = vrot.lane.b32.xlu0 %v1555, 4
        %v1557 = vpop.permute.xlu0 %1556
        %v1559 = vsub.f32 %v1374, %v1557
        %1560 = vrot.lane.b32.xlu0 %v1526, 124
        %v1561 = vpop.permute.xlu0 %1560
        %v1563 = vmul.f32 %v1121, %v1561
        %v1565 = vrot.slane %v1563, 2
        %1566 = vrot.lane.b32.xlu0 %v1565, 4
        %v1567 = vpop.permute.xlu0 %1566
        %v1569 = vsub.f32 %v1559, %v1567
        %1570 = vrot.lane.b32.xlu0 %v1514, 124
        %v1571 = vpop.permute.xlu0 %1570
        %v1573 = vmul.f32 %v1220, %v1571
        %v1575 = vrot.slane %v1573, 3
        %1576 = vrot.lane.b32.xlu0 %v1575, 4
        %v1577 = vpop.permute.xlu0 %1576
        %v1579 = vsub.f32 %v1569, %v1577
        %v1580 = vmul.f32 %v1579, %v1373
        %1582 = vrot.lane.b32.xlu0 %v1580, 123
        %v1583 = vpop.permute.xlu0 %1582
        %v1585 = vmul.f32 %v1002, %v1583
        %v1587 = vrot.slane %v1585, 1
        %1588 = vrot.lane.b32.xlu0 %v1587, 5
        %v1589 = vpop.permute.xlu0 %1588
        %v1591 = vsub.f32 %v1348, %v1589
        %1592 = vrot.lane.b32.xlu0 %v1548, 123
        %v1593 = vpop.permute.xlu0 %1592
        %v1595 = vmul.f32 %v1037, %v1593
        %v1597 = vrot.slane %v1595, 2
        %1598 = vrot.lane.b32.xlu0 %v1597, 5
        %v1599 = vpop.permute.xlu0 %1598
        %v1601 = vsub.f32 %v1591, %v1599
        %1602 = vrot.lane.b32.xlu0 %v1526, 123
        %v1603 = vpop.permute.xlu0 %1602
        %v1605 = vmul.f32 %v1101, %v1603
        %v1607 = vrot.slane %v1605, 3
        %1608 = vrot.lane.b32.xlu0 %v1607, 5
        %v1609 = vpop.permute.xlu0 %1608
        %v1611 = vsub.f32 %v1601, %v1609
        %1612 = vrot.lane.b32.xlu0 %v1514, 123
        %v1613 = vpop.permute.xlu0 %1612
        %v1615 = vmul.f32 %v1200, %v1613
        %v1617 = vrot.slane %v1615, 4
        %1618 = vrot.lane.b32.xlu0 %v1617, 5
        %v1619 = vpop.permute.xlu0 %1618
        %v1621 = vsub.f32 %v1611, %v1619
        %v1622 = vmul.f32 %v1621, %v1347
        %1624 = vrot.lane.b32.xlu0 %v1622, 122
        %v1625 = vpop.permute.xlu0 %1624
        %v1627 = vmul.f32 %v971, %v1625
        %v1629 = vrot.slane %v1627, 1
        %1630 = vrot.lane.b32.xlu0 %v1629, 6
        %v1631 = vpop.permute.xlu0 %1630
        %v1633 = vsub.f32 %v1332, %v1631
        %1634 = vrot.lane.b32.xlu0 %v1580, 122
        %v1635 = vpop.permute.xlu0 %1634
        %v1637 = vmul.f32 %v988, %v1635
        %v1639 = vrot.slane %v1637, 2
        %1640 = vrot.lane.b32.xlu0 %v1639, 6
        %v1641 = vpop.permute.xlu0 %1640
        %v1643 = vsub.f32 %v1633, %v1641
        %1644 = vrot.lane.b32.xlu0 %v1548, 122
        %v1645 = vpop.permute.xlu0 %1644
        %v1647 = vmul.f32 %v1025, %v1645
        %v1649 = vrot.slane %v1647, 3
        %1650 = vrot.lane.b32.xlu0 %v1649, 6
        %v1651 = vpop.permute.xlu0 %1650
        %v1653 = vsub.f32 %v1643, %v1651
        %1654 = vrot.lane.b32.xlu0 %v1526, 122
        %v1655 = vpop.permute.xlu0 %1654
        %v1657 = vmul.f32 %v1089, %v1655
        %v1659 = vrot.slane %v1657, 4
        %1660 = vrot.lane.b32.xlu0 %v1659, 6
        %v1661 = vpop.permute.xlu0 %1660
        %v1663 = vsub.f32 %v1653, %v1661
        %1664 = vrot.lane.b32.xlu0 %v1514, 122
        %v1665 = vpop.permute.xlu0 %1664
        %v1667 = vmul.f32 %v1188, %v1665
        %v1669 = vrot.slane %v1667, 5
        %1670 = vrot.lane.b32.xlu0 %v1669, 6
        %v1671 = vpop.permute.xlu0 %1670
        %v1673 = vsub.f32 %v1663, %v1671
        %v1674 = vmul.f32 %v1673, %v1331
        %v1675 = vmul.f32 %v1548, %v1548
        %v1676 = vmul.f32 %v1526, %v1526
        %v1678 = vrot.slane %v1676, 1
        %v1680 = vadd.f32 %v1675, %v1678
        %v1681 = vmul.f32 %v1514, %v1514
        %v1683 = vrot.slane %v1681, 2
        %v1685 = vadd.f32 %v1680, %v1683
        %v1686 = vmul.f32 %v1685, -8.220635e-18
        %v1687 = vadd.f32 %v1686, 2.8114574e-15
        %v1688 = vmul.f32 %v1685, %v1687
        %v1689 = vadd.f32 %v1688, -7.6471636e-13
        %v1690 = vmul.f32 %v1685, %v1689
        %v1691 = vadd.f32 %v1690, 1.6059044e-10
        %v1692 = vmul.f32 %v1685, %v1691
        %v1693 = vadd.f32 %v1692, -2.5052108e-08
        %v1694 = vmul.f32 %v1685, %v1693
        %v1695 = vadd.f32 %v1694, 2.7557319e-06
        %v1696 = vmul.f32 %v1685, %v1695
        %v1697 = vadd.f32 %v1696, -0.0001984127
        %v1698 = vmul.f32 %v1685, %v1697
        %v1699 = vadd.f32 %v1698, 0.008333334
        %v1700 = vmul.f32 %v1685, %v1699
        %v1701 = vadd.f32 %v1700, -0.16666667
        %v1702 = vmul.f32 %v1685, %v1701
        %v1703 = vadd.f32 %v1702, 1.0
        %v1704 = vmul.f32 %v1685, -4.1103176e-19
        %v1705 = vadd.f32 %v1704, 1.5619207e-16
        %v1706 = vmul.f32 %v1685, %v1705
        %v1707 = vadd.f32 %v1706, -4.7794773e-14
        %v1708 = vmul.f32 %v1685, %v1707
        %v1709 = vadd.f32 %v1708, 1.1470745e-11
        %v1710 = vmul.f32 %v1685, %v1709
        %v1711 = vadd.f32 %v1710, -2.0876756e-09
        %v1712 = vmul.f32 %v1685, %v1711
        %v1713 = vadd.f32 %v1712, 2.755732e-07
        %v1714 = vmul.f32 %v1685, %v1713
        %v1715 = vadd.f32 %v1714, -2.4801588e-05
        %v1716 = vmul.f32 %v1685, %v1715
        %v1717 = vadd.f32 %v1716, 0.0013888889
        %v1718 = vmul.f32 %v1685, %v1717
        %v1719 = vadd.f32 %v1718, -0.041666668
        %v1720 = vmul.f32 %v1685, %v1719
        %v1721 = vadd.f32 %v1720, 0.5
        %v1722 = vmul.f32 %v1685, -1.9572942e-20
        %v1723 = vadd.f32 %v1722, 8.220635e-18
        %v1724 = vmul.f32 %v1685, %v1723
        %v1725 = vadd.f32 %v1724, -2.8114574e-15
        %v1726 = vmul.f32 %v1685, %v1725
        %v1727 = vadd.f32 %v1726, 7.6471636e-13
        %v1728 = vmul.f32 %v1685, %v1727
        %v1729 = vadd.f32 %v1728, -1.6059044e-10
        %v1730 = vmul.f32 %v1685, %v1729
        %v1731 = vadd.f32 %v1730, 2.5052108e-08
        %v1732 = vmul.f32 %v1685, %v1731
        %v1733 = vadd.f32 %v1732, -2.7557319e-06
        %v1734 = vmul.f32 %v1685, %v1733
        %v1735 = vadd.f32 %v1734, 0.0001984127
        %v1736 = vmul.f32 %v1685, %v1735
        %v1737 = vadd.f32 %v1736, -0.008333334
        %v1738 = vmul.f32 %v1685, %v1737
        %v1739 = vadd.f32 %v1738, 0.16666667
        %v1740 = vsub.f32 0.0, %v1514
        %v1741 = vsub.f32 0.0, %v1548
        %v1742 = vsub.f32 0.0, %v1526
        %v1743 = vsub.f32 %v1675, %v1685
        %v1744 = vmul.f32 %v1721, %v1743
        %v1745 = vadd.f32 %v1744, 1.0
        %v1746 = vrot.slane %v1526, 1
        %v1748 = vmul.f32 %v1548, %v1746
        %v1750 = vrot.slane %v1740, 2
        %v1752 = vmul.f32 %v1703, %v1750
        %v1753 = vmul.f32 %v1721, %v1748
        %v1754 = vadd.f32 %v1752, %v1753
        %v1755 = vrot.slane %v1514, 2
        %v1757 = vmul.f32 %v1548, %v1755
        %v1758 = vmul.f32 %v1703, %v1746
        %v1759 = vmul.f32 %v1721, %v1757
        %v1760 = vadd.f32 %v1758, %v1759
        %v1761 = vmul.f32 %v1703, %v1755
        %v1762 = vadd.f32 %v1761, %v1753
        %v1764 = vrot.slane %v1685, 7
        %v1766 = vsub.f32 %v1676, %v1764
        %v1768 = vrot.slane %v1766, 1
        %v1770 = vmul.f32 %v1721, %v1768
        %v1771 = vadd.f32 %v1770, 1.0
        %v1772 = vrot.slane %v1514, 1
        %v1774 = vmul.f32 %v1526, %v1772
        %v1775 = vmul.f32 %v1703, %v1741
        %v1777 = vrot.slane %v1774, 1
        %v1779 = vmul.f32 %v1721, %v1777
        %v1780 = vadd.f32 %v1775, %v1779
        %v1782 = vrot.slane %v1742, 1
        %v1784 = vmul.f32 %v1703, %v1782
        %v1785 = vadd.f32 %v1784, %v1759
        %v1786 = vmul.f32 %v1703, %v1548
        %v1787 = vadd.f32 %v1786, %v1779
        %v1788 = vrot.slane %v1685, 6
        %v1790 = vsub.f32 %v1681, %v1788
        %v1792 = vrot.slane %v1790, 2
        %v1794 = vmul.f32 %v1721, %v1792
        %v1795 = vadd.f32 %v1794, 1.0
        %v1796 = vmul.f32 %v1739, %v1743
        %v1797 = vadd.f32 %v1796, 1.0
        %v1798 = vmul.f32 %v1721, %v1750
        %v1799 = vmul.f32 %v1739, %v1748
        %v1800 = vadd.f32 %v1798, %v1799
        %v1801 = vmul.f32 %v1721, %v1746
        %v1802 = vmul.f32 %v1739, %v1757
        %v1803 = vadd.f32 %v1801, %v1802
        %v1804 = vmul.f32 %v1721, %v1755
        %v1805 = vadd.f32 %v1804, %v1799
        %v1806 = vmul.f32 %v1739, %v1768
        %v1807 = vadd.f32 %v1806, 1.0
        %v1808 = vmul.f32 %v1721, %v1741
        %v1809 = vmul.f32 %v1739, %v1777
        %v1810 = vadd.f32 %v1808, %v1809
        %v1811 = vmul.f32 %v1721, %v1782
        %v1812 = vadd.f32 %v1811, %v1802
        %v1813 = vmul.f32 %v1721, %v1548
        %v1814 = vadd.f32 %v1813, %v1809
        %v1815 = vmul.f32 %v1739, %v1792
        %v1816 = vadd.f32 %v1815, 1.0
        %v1818 = vrot.slane %v1674, 5
        %v1820 = vmul.f32 %v1797, %v1818
        %v1821 = vrot.slane %v1622, 6
        %v1823 = vmul.f32 %v1800, %v1821
        %v1824 = vadd.f32 %v1820, %v1823
        %v1825 = vrot.slane %v1580, 7
        %v1827 = vmul.f32 %v1803, %v1825
        %v1828 = vadd.f32 %v1824, %v1827
        %v1829 = vmul.f32 %v1805, %v1818
        %v1830 = vmul.f32 %v1807, %v1821
        %v1831 = vadd.f32 %v1829, %v1830
        %v1832 = vmul.f32 %v1810, %v1825
        %v1833 = vadd.f32 %v1831, %v1832
        %v1834 = vmul.f32 %v1812, %v1818
        %v1835 = vmul.f32 %v1814, %v1821
        %v1836 = vadd.f32 %v1834, %v1835
        %v1837 = vmul.f32 %v1816, %v1825
        %v1838 = vadd.f32 %v1836, %v1837
        %v1839 = vrot.slane %v332, 5
        %1840 = vrot.lane.b32.xlu0 %v1839, 6
        %v1841 = vpop.permute.xlu0 %1840
        %v1843 = vmul.f32 %v1745, %v1841
        %v1844 = vrot.slane %v335, 5
        %1845 = vrot.lane.b32.xlu0 %v1844, 6
        %v1846 = vpop.permute.xlu0 %1845
        %v1848 = vmul.f32 %v1754, %v1846
        %v1849 = vadd.f32 %v1843, %v1848
        %v1850 = vrot.slane %v338, 5
        %1851 = vrot.lane.b32.xlu0 %v1850, 6
        %v1852 = vpop.permute.xlu0 %1851
        %v1854 = vmul.f32 %v1760, %v1852
        %v1855 = vadd.f32 %v1849, %v1854
        %v1856 = vrot.slane %v333, 5
        %1857 = vrot.lane.b32.xlu0 %v1856, 6
        %v1858 = vpop.permute.xlu0 %1857
        %v1860 = vmul.f32 %v1745, %v1858
        %v1861 = vrot.slane %v336, 5
        %1862 = vrot.lane.b32.xlu0 %v1861, 6
        %v1863 = vpop.permute.xlu0 %1862
        %v1865 = vmul.f32 %v1754, %v1863
        %v1866 = vadd.f32 %v1860, %v1865
        %v1867 = vrot.slane %v339, 5
        %1868 = vrot.lane.b32.xlu0 %v1867, 6
        %v1869 = vpop.permute.xlu0 %1868
        %v1871 = vmul.f32 %v1760, %v1869
        %v1872 = vadd.f32 %v1866, %v1871
        %v1873 = vrot.slane %v334, 5
        %1874 = vrot.lane.b32.xlu0 %v1873, 6
        %v1875 = vpop.permute.xlu0 %1874
        %v1877 = vmul.f32 %v1745, %v1875
        %v1878 = vrot.slane %v337, 5
        %1879 = vrot.lane.b32.xlu0 %v1878, 6
        %v1880 = vpop.permute.xlu0 %1879
        %v1882 = vmul.f32 %v1754, %v1880
        %v1883 = vadd.f32 %v1877, %v1882
        %v1884 = vrot.slane %v340, 5
        %1885 = vrot.lane.b32.xlu0 %v1884, 6
        %v1886 = vpop.permute.xlu0 %1885
        %v1888 = vmul.f32 %v1760, %v1886
        %v1889 = vadd.f32 %v1883, %v1888
        %v1890 = vmul.f32 %v1762, %v1841
        %v1891 = vmul.f32 %v1771, %v1846
        %v1892 = vadd.f32 %v1890, %v1891
        %v1893 = vmul.f32 %v1780, %v1852
        %v1894 = vadd.f32 %v1892, %v1893
        %v1895 = vmul.f32 %v1762, %v1858
        %v1896 = vmul.f32 %v1771, %v1863
        %v1897 = vadd.f32 %v1895, %v1896
        %v1898 = vmul.f32 %v1780, %v1869
        %v1899 = vadd.f32 %v1897, %v1898
        %v1900 = vmul.f32 %v1762, %v1875
        %v1901 = vmul.f32 %v1771, %v1880
        %v1902 = vadd.f32 %v1900, %v1901
        %v1903 = vmul.f32 %v1780, %v1886
        %v1904 = vadd.f32 %v1902, %v1903
        %v1905 = vmul.f32 %v1785, %v1841
        %v1906 = vmul.f32 %v1787, %v1846
        %v1907 = vadd.f32 %v1905, %v1906
        %v1908 = vmul.f32 %v1795, %v1852
        %v1909 = vadd.f32 %v1907, %v1908
        %v1910 = vmul.f32 %v1785, %v1858
        %v1911 = vmul.f32 %v1787, %v1863
        %v1912 = vadd.f32 %v1910, %v1911
        %v1913 = vmul.f32 %v1795, %v1869
        %v1914 = vadd.f32 %v1912, %v1913
        %v1915 = vmul.f32 %v1785, %v1875
        %v1916 = vmul.f32 %v1787, %v1880
        %v1917 = vadd.f32 %v1915, %v1916
        %v1918 = vmul.f32 %v1795, %v1886
        %v1919 = vadd.f32 %v1917, %v1918
        %v1920 = vrot.slane %v341, 5
        %1921 = vrot.lane.b32.xlu0 %v1920, 6
        %v1922 = vpop.permute.xlu0 %1921
        %v1924 = vmul.f32 %v1745, %v1922
        %v1925 = vrot.slane %v342, 5
        %1926 = vrot.lane.b32.xlu0 %v1925, 6
        %v1927 = vpop.permute.xlu0 %1926
        %v1929 = vmul.f32 %v1754, %v1927
        %v1930 = vadd.f32 %v1924, %v1929
        %v1931 = vrot.slane %v343, 5
        %1932 = vrot.lane.b32.xlu0 %v1931, 6
        %v1933 = vpop.permute.xlu0 %1932
        %v1935 = vmul.f32 %v1760, %v1933
        %v1936 = vadd.f32 %v1930, %v1935
        %v1937 = vadd.f32 %v1936, %v1828
        %v1938 = vmul.f32 %v1762, %v1922
        %v1939 = vmul.f32 %v1771, %v1927
        %v1940 = vadd.f32 %v1938, %v1939
        %v1941 = vmul.f32 %v1780, %v1933
        %v1942 = vadd.f32 %v1940, %v1941
        %v1943 = vadd.f32 %v1942, %v1833
        %v1944 = vmul.f32 %v1785, %v1922
        %v1945 = vmul.f32 %v1787, %v1927
        %v1946 = vadd.f32 %v1944, %v1945
        %v1947 = vmul.f32 %v1795, %v1933
        %v1948 = vadd.f32 %v1946, %v1947
        %v1949 = vadd.f32 %v1948, %v1838
        %v1951 = vrot.slane %v1855, 3
        %1952 = vrot.lane.b32.xlu0 %v1951, 122
        %v1953 = vpop.permute.xlu0 %1952
        %v1956 = vrot.slane %v1872, 3
        %1957 = vrot.lane.b32.xlu0 %v1956, 122
        %v1958 = vpop.permute.xlu0 %1957
        %v1961 = vrot.slane %v1889, 3
        %1962 = vrot.lane.b32.xlu0 %v1961, 122
        %v1963 = vpop.permute.xlu0 %1962
        %v1966 = vrot.slane %v1894, 3
        %1967 = vrot.lane.b32.xlu0 %v1966, 122
        %v1968 = vpop.permute.xlu0 %1967
        %v1971 = vrot.slane %v1899, 3
        %1972 = vrot.lane.b32.xlu0 %v1971, 122
        %v1973 = vpop.permute.xlu0 %1972
        %v1976 = vrot.slane %v1904, 3
        %1977 = vrot.lane.b32.xlu0 %v1976, 122
        %v1978 = vpop.permute.xlu0 %1977
        %v1981 = vrot.slane %v1909, 3
        %1982 = vrot.lane.b32.xlu0 %v1981, 122
        %v1983 = vpop.permute.xlu0 %1982
        %v1986 = vrot.slane %v1914, 3
        %1987 = vrot.lane.b32.xlu0 %v1986, 122
        %v1988 = vpop.permute.xlu0 %1987
        %v1991 = vrot.slane %v1919, 3
        %1992 = vrot.lane.b32.xlu0 %v1991, 122
        %v1993 = vpop.permute.xlu0 %1992
        %v1996 = vrot.slane %v1937, 3
        %1997 = vrot.lane.b32.xlu0 %v1996, 122
        %v1998 = vpop.permute.xlu0 %1997
        %v2001 = vrot.slane %v1943, 3
        %2002 = vrot.lane.b32.xlu0 %v2001, 122
        %v2003 = vpop.permute.xlu0 %2002
        %v2006 = vrot.slane %v1949, 3
        %2007 = vrot.lane.b32.xlu0 %v2006, 122
        %v2008 = vpop.permute.xlu0 %2007
      $region45: #{lieopt_pose_forward.1} parent=39 // loop_footer
        %s331 = sadd.s32 1, %s327
      $region46: #{lieopt_pose_forward.1} parent=39 // loop_footer_branch
        %326 = sbr.rel target = $region42
      $region47: #{lieopt_pose_forward.1} parent=39 // loop_exit
        _
      %v2011 = vrot.slane %v333, 7
      %v2014 = vrot.slane %v334, 6
      %v2017 = vrot.slane %v335, 5
      %v2020 = vrot.slane %v336, 4
      %v2023 = vrot.slane %v337, 3
      %v2026 = vrot.slane %v338, 2
      %v2029 = vrot.slane %v339, 1
      %v2032 = vrot.slane %v341, 7
      %v2035 = vrot.slane %v342, 6
      %v2038 = vrot.slane %v343, 5
      %vm2040 = vcmask 1040384
      %v2041 = vsel %vm2040, %v332, %v2011
      %vm2042 = vcmask 1041408
      %v2043 = vsel %vm2042, %v2041, %v2014
      %vm2044 = vcmask 1042432
      %v2045 = vsel %vm2044, %v2043, %v2017
      %vm2046 = vcmask 1043456
      %v2047 = vsel %vm2046, %v2045, %v2020
      %vm2048 = vcmask 1044480
      %v2049 = vsel %vm2048, %v2047, %v2023
      %vm2050 = vcmask 1045504
      %v2051 = vsel %vm2050, %v2049, %v2026
      %vm2052 = vcmask 1046528
      %v2053 = vsel %vm2052, %v2051, %v2029
      %v2054 = vsel %vm2040, %v340, %v2032
      %v2055 = vsel %vm2042, %v2054, %v2035
      %v2056 = vsel %vm2044, %v2055, %v2038
      %vm2057 = vcmask 7168
      %2058 = vst.msk [vmem:[%s286] sm:$0xff] %vm2057, %v2053
      %vm2059 = vcmask 3072
      %2060 = vst.msk [vmem:[%s286 + $0x8] sm:$0xf] %vm2059, %v2056
      %p2061 = scmp.lt.s32.totalorder %s16, 1
      %s2062 = scalar_select %p2061, %s16, 1
      %s2063 = smul.addr %s2062, 2
      %s2064 = smul.addr %s2063, 8
      %s2065 = scalar_lea.vmem %s5, %s2064
      // Predicated region
      $region48: #{lieopt_pose_forward.1} parent=39 // pred_check
        %p2066 = pneg %p164
      $region49: #{lieopt_pose_forward.1} parent=39 // pred_check_branch
        %2068 = sbr.rel (%p2066) target = $region51
      $region50: #{lieopt_pose_forward.1} parent=39 // pred_region
        _
      $region51: #{lieopt_pose_forward.1} parent=39 // pred_fallthru
        _
    $region40: #{lieopt_pose_forward.1} parent=5 // pred_fallthru
      _
    %p2069 = scmp.le.s32.totalorder 2, %s11
    // Predicated region
    $region52: #{lieopt_pose_forward.1} parent=5 // pred_check
      %p2070 = pneg %p2069
    $region53: #{lieopt_pose_forward.1} parent=5 // pred_check_branch
      %2072 = sbr.rel (%p2070) target = $region55
    $region54: #{lieopt_pose_forward.1} parent=5 // pred_region
      %s2073 = ssub.s32 %s11, 2
      // Predicated region
      $region56: #{lieopt_pose_forward.1} parent=54 // pred_check
        %p2074 = pneg %p170
      $region57: #{lieopt_pose_forward.1} parent=54 // pred_check_branch
        %2076 = sbr.rel (%p2074) target = $region59
      $region58: #{lieopt_pose_forward.1} parent=54 // pred_region
        %p2077 = scmp.lt.s32.totalorder %s17, 1
        %s2078 = scalar_select %p2077, %s17, 1
        %s2079 = smul.addr %s2078, 2
        %s2080 = smul.addr %s2079, 8
        %s2081 = scalar_lea.vmem %s5, %s2080
      $region59: #{lieopt_pose_forward.1} parent=54 // pred_fallthru
        _
    $region55: #{lieopt_pose_forward.1} parent=5 // pred_fallthru
      _
  $region6: #{lieopt_pose_forward.1} parent=0 // loop_footer
    %s15 = sadd.s32 1, %s11
  $region7: #{lieopt_pose_forward.1} parent=0 // loop_footer_branch
    %10 = sbr.rel target = $region3
  $region8: #{lieopt_pose_forward.1} parent=0 // loop_exit
    _

</llo_original>
